<compile_context>
chip_gen: v6e
topology: v6e:2x2x1
jax: 0.10.0
libtpu: 0.0.40
codegen_flags: <defaults>
</compile_context>

<pallas_src>
import jax
import jax.numpy as jnp
from jax import lax
from jax.experimental import pallas as pl
from jax.experimental.pallas import tpu as pltpu

NEG_SLOPE = 0.01   # nn.LeakyReLU default
BN_EPS = 1e-5


def _double_conv_kernel(xpad_ref, w1_ref, b1_ref, w2_ref, b2_ref, o_ref,
                        col1_ref, pad2_ref, col2_ref):
    """DoubleConv (conv3x3 + BN + LeakyReLU, twice) on one batch block.

    xpad_ref : (nb, Hh+2, Wh+2, cin)  bf16 pre-padded pooled NHWC activations
    w1_ref   : (9*cin, c1)            bf16 conv1 weight * BN1 scale (ky,kx,ci rows)
    w2_ref   : (9*c1,  c2)            bf16 conv2 weight * BN2 scale
    b1/b2    : (1, c)                 f32  folded BatchNorm shift
    o_ref    : (1, nb*Hh*Wh, c2)      f32  flat output, rows ordered (n, i, j)
    col*_ref : (nb, Hh, Wh, 9*C)      bf16 im2col scratch
    pad2_ref : (nb, Hh+2, Wh+2, c1)   bf16 conv2 padded-input scratch
    """
    nb, Hp, Wp, cin = xpad_ref.shape
    Hh, Wh = Hp - 2, Wp - 2
    c1 = w1_ref.shape[-1]
    M = nb * Hh * Wh
    taps = tuple((ky, kx) for ky in range(3) for kx in range(3))

    def conv3x3(src_ref, col_ref, w_ref, C):
        # im2col gather: 9 shifted (nb,Hh,Wh,C) windows laid side by side on
        # the lane dim, then ONE MXU matmul with K = 9*C.
        for t, (ky, kx) in enumerate(taps):
            col_ref[:, :, :, t * C:(t + 1) * C] = (
                src_ref[:, ky:ky + Hh, kx:kx + Wh, :])
        col = col_ref[...].reshape(M, 9 * C)
        return jnp.dot(col, w_ref[...], preferred_element_type=jnp.float32)

    # ---- conv1 (BN scale pre-folded into weights) + shift + LeakyReLU ----
    y = conv3x3(xpad_ref, col1_ref, w1_ref, cin)            # (M, c1) f32
    y = y + b1_ref[...]
    y = jnp.where(y > 0, y, NEG_SLOPE * y)

    # ---- conv2: rebuild the zero border each step (not gated on program_id:
    # the "parallel" batch axis may be split across TensorCores), then write
    # the bf16 interior once and run the second im2col matmul ----
    zr = jnp.zeros((nb, 1, Wh + 2, c1), pad2_ref.dtype)
    pad2_ref[:, 0:1, :, :] = zr
    pad2_ref[:, Hh + 1:Hh + 2, :, :] = zr
    zc = jnp.zeros((nb, Hh + 2, 1, c1), pad2_ref.dtype)
    pad2_ref[:, :, 0:1, :] = zc
    pad2_ref[:, :, Wh + 1:Wh + 2, :] = zc
    pad2_ref[:, 1:Hh + 1, 1:Wh + 1, :] = (
        y.reshape(nb, Hh, Wh, c1).astype(pad2_ref.dtype))

    y = conv3x3(pad2_ref, col2_ref, w2_ref, c1)              # (M, c2) f32
    y = y + b2_ref[...]
    y = jnp.where(y > 0, y, NEG_SLOPE * y)

    # Store straight from the flat accumulator; wrapper restores NCHW.
    o_ref[0] = y.astype(o_ref.dtype)


def _vmem_plan():
    """Generation-aware VMEM budget (scratch+IO per step) and scoped limit."""
    cap = 64 * 1024 * 1024                       # conservative fallback (v7x)
    try:
        info = pltpu.get_tpu_info()
        c = getattr(info, "vmem_capacity_bytes", None)
        if c:
            cap = int(c)
    except Exception:
        pass
    budget = int(cap * 0.60)                     # headroom for compiler scratch
    vmem_limit = max(32 * 1024 * 1024, min(int(cap * 0.85), 128 * 1024 * 1024))
    return budget, vmem_limit


def _pick_batch_block(N, Hh, Wh, cin, c1, c2, budget):
    """Images per grid step: largest divisor that fits the VMEM budget while
    keeping grid >= 2 when possible (v7x megacore / DMA pipelining)."""

    def step_bytes(nb):
        m = nb * Hh * Wh
        cols = m * 9 * (cin + c1) * 2                          # bf16 im2col scratch
        pad2 = nb * (Hh + 2) * (Wh + 2) * c1 * 2               # bf16 conv2 pad scratch
        io = (2 * nb * (Hh + 2) * (Wh + 2) * cin * 2           # dbl-buffered bf16 input
              + 2 * m * c2 * 4)                                # dbl-buffered f32 output
        live = m * (c1 + c2) * 4                               # f32 intermediates
        return cols + pad2 + io + live

    divisors = [d for d in range(1, N + 1) if N % d == 0]
    fitting = [d for d in divisors if step_bytes(d) <= budget] or [1]
    capped = [d for d in fitting if N // d >= 2] or fitting
    return capped[-1]


def down_forward(x_nchw, params):
    """Pallas forward of `Down` (MaxPool2d(2,2) + DoubleConv). NCHW in/out."""
    w1, s1, b1, w2, s2, b2 = params              # HWIO f32 weights, folded BN
    N, cin, H, W = x_nchw.shape
    Hh, Wh = H // 2, W // 2
    c1 = w1.shape[-1]
    c2 = w2.shape[-1]

    # MaxPool2d(2,2) fused with the NCHW->NHWC layout change, then pre-padded
    # and cast to bf16 in one XLA pass (kernel reads only the thin halo extra).
    x = x_nchw[:, :, :2 * Hh, :2 * Wh]           # floor() behaviour for odd H/W
    x = jnp.transpose(x, (0, 2, 3, 1))
    pooled = jnp.max(x.reshape(N, Hh, 2, Wh, 2, cin), axis=(2, 4))
    xpad = jnp.pad(pooled, ((0, 0), (1, 1), (1, 1), (0, 0))).astype(jnp.bfloat16)

    # Conv weights as (9*Cin, Cout) im2col matrices with the BN scale folded in
    # (f32 multiply first, then one bf16 cast). Row order = (ky, kx, ci).
    w1_mat = (w1.reshape(9 * cin, c1) * s1[None, :]).astype(jnp.bfloat16)
    w2_mat = (w2.reshape(9 * c1, c2) * s2[None, :]).astype(jnp.bfloat16)

    budget, vmem_limit = _vmem_plan()
    nb = _pick_batch_block(N, Hh, Wh, cin, c1, c2, budget)
    grid = N // nb
    M = nb * Hh * Wh

    flops = 2 * N * Hh * Wh * 9 * (cin * c1 + c1 * c2)
    bytes_accessed = (xpad.size * 2 + N * Hh * Wh * c2 * 4
                      + w1_mat.size * 2 + w2_mat.size * 2 + (c1 + c2) * 4)

    out_flat = pl.pallas_call(
        _double_conv_kernel,
        out_shape=jax.ShapeDtypeStruct((grid, M, c2), jnp.float32),
        grid_spec=pltpu.PrefetchScalarGridSpec(
            num_scalar_prefetch=0,
            grid=(grid,),
            in_specs=[
                pl.BlockSpec((nb, Hh + 2, Wh + 2, cin), lambda b: (b, 0, 0, 0)),
                pl.BlockSpec((9 * cin, c1), lambda b: (0, 0)),
                pl.BlockSpec((1, c1), lambda b: (0, 0)),
                pl.BlockSpec((9 * c1, c2), lambda b: (0, 0)),
                pl.BlockSpec((1, c2), lambda b: (0, 0)),
            ],
            out_specs=pl.BlockSpec((1, M, c2), lambda b: (b, 0, 0)),
            scratch_shapes=[
                pltpu.VMEM((nb, Hh, Wh, 9 * cin), jnp.bfloat16),
                pltpu.VMEM((nb, Hh + 2, Wh + 2, c1), jnp.bfloat16),
                pltpu.VMEM((nb, Hh, Wh, 9 * c1), jnp.bfloat16),
            ],
        ),
        compiler_params=pltpu.CompilerParams(
            dimension_semantics=("parallel",),
            vmem_limit_bytes=vmem_limit),
        cost_estimate=pl.CostEstimate(flops=flops, transcendentals=0,
                                      bytes_accessed=bytes_accessed),
    )(xpad, w1_mat, b1.reshape(1, c1), w2_mat, b2.reshape(1, c2))

    out_nhwc = out_flat.reshape(N, Hh, Wh, c2)
    return jnp.transpose(out_nhwc, (0, 3, 1, 2))              # back to NCHW


def make_params(key, in_ch, out_ch):
    """Deterministic synthetic parameters matching the module's shapes."""
    ks = jax.random.split(key, 10)
    # Conv weights, PyTorch layout (O, I, 3, 3) -> stored as HWIO.
    w1_oihw = jax.random.normal(ks[0], (out_ch, in_ch, 3, 3), jnp.float32) * 0.2
    w2_oihw = jax.random.normal(ks[1], (out_ch, out_ch, 3, 3), jnp.float32) * 0.2
    w1 = jnp.transpose(w1_oihw, (2, 3, 1, 0))
    w2 = jnp.transpose(w2_oihw, (2, 3, 1, 0))
    # BatchNorm (eval mode): gamma, beta, running_mean, running_var.
    g1 = 1.0 + 0.1 * jax.random.normal(ks[2], (out_ch,), jnp.float32)
    be1 = 0.1 * jax.random.normal(ks[3], (out_ch,), jnp.float32)
    m1 = 0.1 * jax.random.normal(ks[4], (out_ch,), jnp.float32)
    v1 = 0.5 + jax.random.uniform(ks[5], (out_ch,), jnp.float32)
    g2 = 1.0 + 0.1 * jax.random.normal(ks[6], (out_ch,), jnp.float32)
    be2 = 0.1 * jax.random.normal(ks[7], (out_ch,), jnp.float32)
    m2 = 0.1 * jax.random.normal(ks[8], (out_ch,), jnp.float32)
    v2 = 0.5 + jax.random.uniform(ks[9], (out_ch,), jnp.float32)
    # Fold BN into scale/shift: y = x*scale + shift.
    s1 = g1 * lax.rsqrt(v1 + BN_EPS)
    b1 = be1 - m1 * s1
    s2 = g2 * lax.rsqrt(v2 + BN_EPS)
    b2 = be2 - m2 * s2
    return (w1, s1, b1, w2, s2, b2)


def ref_forward(x_nchw, params):
    """Pure-JAX reference mirroring the kernel's precision policy
    (BN scale folded into bf16 conv weights, f32 accumulation / shift / LeakyReLU)."""
    w1, s1, b1, w2, s2, b2 = params
    N, cin, H, W = x_nchw.shape
    Hh, Wh = H // 2, W // 2
    x = jnp.transpose(x_nchw[:, :, :2 * Hh, :2 * Wh], (0, 2, 3, 1))
    x = x.reshape(N, Hh, 2, Wh, 2, cin).max(axis=(2, 4))
    dn = ("NHWC", "HWIO", "NHWC")
    w1s = (w1 * s1).astype(jnp.bfloat16)
    w2s = (w2 * s2).astype(jnp.bfloat16)
    y = lax.conv_general_dilated(
        x.astype(jnp.bfloat16), w1s, (1, 1), "SAME",
        dimension_numbers=dn, preferred_element_type=jnp.float32)
    y = y + b1
    y = jnp.where(y > 0, y, NEG_SLOPE * y)
    y = lax.conv_general_dilated(
        y.astype(jnp.bfloat16), w2s, (1, 1), "SAME",
        dimension_numbers=dn, preferred_element_type=jnp.float32)
    y = y + b2
    y = jnp.where(y > 0, y, NEG_SLOPE * y)
    return jnp.transpose(y, (0, 3, 1, 2))


if __name__ == "__main__":
    N, IN_CH, OUT_CH, H, W = 2, 4, 8, 16, 16

    key = jax.random.PRNGKey(0)
    kx, kp = jax.random.split(key)
    x = jax.random.normal(kx, (N, IN_CH, H, W), jnp.float32)
    params = make_params(kp, IN_CH, OUT_CH)

    out = jax.block_until_ready(jax.jit(down_forward)(x, params))
    expected = jax.block_until_ready(jax.jit(ref_forward)(x, params))

    assert out.shape == (N, OUT_CH, H // 2, W // 2), out.shape
    assert jnp.allclose(out, expected, rtol=1e-3, atol=1e-3), (
        float(jnp.max(jnp.abs(out - expected))))
    print("KERNEL_OK")
</pallas_src>

<mosaic_0001>
module attributes {stable_mosaic.version = 11 : i64} {
  func.func @_double_conv_kernel(%arg0: i32, %arg1: memref<1x10x10x4xbf16, #tpu.memory_space<vmem>>, %arg2: memref<36x8xbf16, #tpu.memory_space<vmem>>, %arg3: memref<1x8xf32, #tpu.memory_space<vmem>>, %arg4: memref<72x8xbf16, #tpu.memory_space<vmem>>, %arg5: memref<1x8xf32, #tpu.memory_space<vmem>>, %arg6: memref<1x64x8xf32, #tpu.memory_space<vmem>>, %arg7: memref<1x8x8x36xbf16, #tpu.memory_space<vmem>>, %arg8: memref<1x10x10x8xbf16, #tpu.memory_space<vmem>>, %arg9: memref<1x8x8x72xbf16, #tpu.memory_space<vmem>>) attributes {dimension_semantics = [#tpu.dimension_semantics<parallel>], iteration_bounds = array<i64: 2>, scalar_prefetch = 0 : i64, scratch_operands = 3 : i64, tpu.core_type = #tpu.core_type<tc>, window_params = [{transform_indices = @transform_0, window_bounds = array<i64: 1, 10, 10, 4>}, {pipeline_mode = #tpu.pipeline_mode<synchronous>, transform_indices = @transform_1, window_bounds = array<i64: 36, 8>}, {pipeline_mode = #tpu.pipeline_mode<synchronous>, transform_indices = @transform_2, window_bounds = array<i64: 1, 8>}, {pipeline_mode = #tpu.pipeline_mode<synchronous>, transform_indices = @transform_3, window_bounds = array<i64: 72, 8>}, {pipeline_mode = #tpu.pipeline_mode<synchronous>, transform_indices = @transform_4, window_bounds = array<i64: 1, 8>}, {transform_indices = @transform_5, window_bounds = array<i64: 1, 64, 8>}]} {
    %c0 = arith.constant 0 : index
    %c0_0 = arith.constant 0 : index
    %c0_1 = arith.constant 0 : index
    %c0_2 = arith.constant 0 : index
    %0 = vector.load %arg1[%c0, %c0_0, %c0_1, %c0_2] : memref<1x10x10x4xbf16, #tpu.memory_space<vmem>>, vector<1x8x8x4xbf16>
    %c0_3 = arith.constant 0 : index
    %c0_4 = arith.constant 0 : index
    %c0_5 = arith.constant 0 : index
    %c0_6 = arith.constant 0 : index
    %1 = vector.load %arg7[%c0_3, %c0_4, %c0_5, %c0_6] : memref<1x8x8x36xbf16, #tpu.memory_space<vmem>>, vector<1x8x8x4xbf16>
    tpu.vector_store %arg7[%c0_3, %c0_4, %c0_5, %c0_6], %0 {strides = array<i32>} : memref<1x8x8x36xbf16, #tpu.memory_space<vmem>>, vector<1x8x8x4xbf16>,
    %c0_7 = arith.constant 0 : index
    %c0_8 = arith.constant 0 : index
    %c1 = arith.constant 1 : index
    %c0_9 = arith.constant 0 : index
    %2 = vector.load %arg1[%c0_7, %c0_8, %c1, %c0_9] : memref<1x10x10x4xbf16, #tpu.memory_space<vmem>>, vector<1x8x8x4xbf16>
    %c0_10 = arith.constant 0 : index
    %c0_11 = arith.constant 0 : index
    %c0_12 = arith.constant 0 : index
    %c4 = arith.constant 4 : index
    %3 = vector.load %arg7[%c0_10, %c0_11, %c0_12, %c4] : memref<1x8x8x36xbf16, #tpu.memory_space<vmem>>, vector<1x8x8x4xbf16>
    tpu.vector_store %arg7[%c0_10, %c0_11, %c0_12, %c4], %2 {strides = array<i32>} : memref<1x8x8x36xbf16, #tpu.memory_space<vmem>>, vector<1x8x8x4xbf16>,
    %c0_13 = arith.constant 0 : index
    %c0_14 = arith.constant 0 : index
    %c2 = arith.constant 2 : index
    %c0_15 = arith.constant 0 : index
    %4 = vector.load %arg1[%c0_13, %c0_14, %c2, %c0_15] : memref<1x10x10x4xbf16, #tpu.memory_space<vmem>>, vector<1x8x8x4xbf16>
    %c0_16 = arith.constant 0 : index
    %c0_17 = arith.constant 0 : index
    %c0_18 = arith.constant 0 : index
    %c8 = arith.constant 8 : index
    %5 = vector.load %arg7[%c0_16, %c0_17, %c0_18, %c8] : memref<1x8x8x36xbf16, #tpu.memory_space<vmem>>, vector<1x8x8x4xbf16>
    tpu.vector_store %arg7[%c0_16, %c0_17, %c0_18, %c8], %4 {strides = array<i32>} : memref<1x8x8x36xbf16, #tpu.memory_space<vmem>>, vector<1x8x8x4xbf16>,
    %c0_19 = arith.constant 0 : index
    %c1_20 = arith.constant 1 : index
    %c0_21 = arith.constant 0 : index
    %c0_22 = arith.constant 0 : index
    %6 = vector.load %arg1[%c0_19, %c1_20, %c0_21, %c0_22] : memref<1x10x10x4xbf16, #tpu.memory_space<vmem>>, vector<1x8x8x4xbf16>
    %c0_23 = arith.constant 0 : index
    %c0_24 = arith.constant 0 : index
    %c0_25 = arith.constant 0 : index
    %c12 = arith.constant 12 : index
    %7 = vector.load %arg7[%c0_23, %c0_24, %c0_25, %c12] : memref<1x8x8x36xbf16, #tpu.memory_space<vmem>>, vector<1x8x8x4xbf16>
    tpu.vector_store %arg7[%c0_23, %c0_24, %c0_25, %c12], %6 {strides = array<i32>} : memref<1x8x8x36xbf16, #tpu.memory_space<vmem>>, vector<1x8x8x4xbf16>,
    %c0_26 = arith.constant 0 : index
    %c1_27 = arith.constant 1 : index
    %c1_28 = arith.constant 1 : index
    %c0_29 = arith.constant 0 : index
    %8 = vector.load %arg1[%c0_26, %c1_27, %c1_28, %c0_29] : memref<1x10x10x4xbf16, #tpu.memory_space<vmem>>, vector<1x8x8x4xbf16>
    %c0_30 = arith.constant 0 : index
    %c0_31 = arith.constant 0 : index
    %c0_32 = arith.constant 0 : index
    %c16 = arith.constant 16 : index
    %9 = vector.load %arg7[%c0_30, %c0_31, %c0_32, %c16] : memref<1x8x8x36xbf16, #tpu.memory_space<vmem>>, vector<1x8x8x4xbf16>
    tpu.vector_store %arg7[%c0_30, %c0_31, %c0_32, %c16], %8 {strides = array<i32>} : memref<1x8x8x36xbf16, #tpu.memory_space<vmem>>, vector<1x8x8x4xbf16>,
    %c0_33 = arith.constant 0 : index
    %c1_34 = arith.constant 1 : index
    %c2_35 = arith.constant 2 : index
    %c0_36 = arith.constant 0 : index
    %10 = vector.load %arg1[%c0_33, %c1_34, %c2_35, %c0_36] : memref<1x10x10x4xbf16, #tpu.memory_space<vmem>>, vector<1x8x8x4xbf16>
    %c0_37 = arith.constant 0 : index
    %c0_38 = arith.constant 0 : index
    %c0_39 = arith.constant 0 : index
    %c20 = arith.constant 20 : index
    %11 = vector.load %arg7[%c0_37, %c0_38, %c0_39, %c20] : memref<1x8x8x36xbf16, #tpu.memory_space<vmem>>, vector<1x8x8x4xbf16>
    tpu.vector_store %arg7[%c0_37, %c0_38, %c0_39, %c20], %10 {strides = array<i32>} : memref<1x8x8x36xbf16, #tpu.memory_space<vmem>>, vector<1x8x8x4xbf16>,
    %c0_40 = arith.constant 0 : index
    %c2_41 = arith.constant 2 : index
    %c0_42 = arith.constant 0 : index
    %c0_43 = arith.constant 0 : index
    %12 = vector.load %arg1[%c0_40, %c2_41, %c0_42, %c0_43] : memref<1x10x10x4xbf16, #tpu.memory_space<vmem>>, vector<1x8x8x4xbf16>
    %c0_44 = arith.constant 0 : index
    %c0_45 = arith.constant 0 : index
    %c0_46 = arith.constant 0 : index
    %c24 = arith.constant 24 : index
    %13 = vector.load %arg7[%c0_44, %c0_45, %c0_46, %c24] : memref<1x8x8x36xbf16, #tpu.memory_space<vmem>>, vector<1x8x8x4xbf16>
    tpu.vector_store %arg7[%c0_44, %c0_45, %c0_46, %c24], %12 {strides = array<i32>} : memref<1x8x8x36xbf16, #tpu.memory_space<vmem>>, vector<1x8x8x4xbf16>,
    %c0_47 = arith.constant 0 : index
    %c2_48 = arith.constant 2 : index
    %c1_49 = arith.constant 1 : index
    %c0_50 = arith.constant 0 : index
    %14 = vector.load %arg1[%c0_47, %c2_48, %c1_49, %c0_50] : memref<1x10x10x4xbf16, #tpu.memory_space<vmem>>, vector<1x8x8x4xbf16>
    %c0_51 = arith.constant 0 : index
    %c0_52 = arith.constant 0 : index
    %c0_53 = arith.constant 0 : index
    %c28 = arith.constant 28 : index
    %15 = vector.load %arg7[%c0_51, %c0_52, %c0_53, %c28] : memref<1x8x8x36xbf16, #tpu.memory_space<vmem>>, vector<1x8x8x4xbf16>
    tpu.vector_store %arg7[%c0_51, %c0_52, %c0_53, %c28], %14 {strides = array<i32>} : memref<1x8x8x36xbf16, #tpu.memory_space<vmem>>, vector<1x8x8x4xbf16>,
    %c0_54 = arith.constant 0 : index
    %c2_55 = arith.constant 2 : index
    %c2_56 = arith.constant 2 : index
    %c0_57 = arith.constant 0 : index
    %16 = vector.load %arg1[%c0_54, %c2_55, %c2_56, %c0_57] : memref<1x10x10x4xbf16, #tpu.memory_space<vmem>>, vector<1x8x8x4xbf16>
    %c0_58 = arith.constant 0 : index
    %c0_59 = arith.constant 0 : index
    %c0_60 = arith.constant 0 : index
    %c32 = arith.constant 32 : index
    %17 = vector.load %arg7[%c0_58, %c0_59, %c0_60, %c32] : memref<1x8x8x36xbf16, #tpu.memory_space<vmem>>, vector<1x8x8x4xbf16>
    tpu.vector_store %arg7[%c0_58, %c0_59, %c0_60, %c32], %16 {strides = array<i32>} : memref<1x8x8x36xbf16, #tpu.memory_space<vmem>>, vector<1x8x8x4xbf16>,
    %c0_61 = arith.constant 0 : index
    %c0_62 = arith.constant 0 : index
    %c0_63 = arith.constant 0 : index
    %c0_64 = arith.constant 0 : index
    %18 = vector.load %arg7[%c0_61, %c0_62, %c0_63, %c0_64] : memref<1x8x8x36xbf16, #tpu.memory_space<vmem>>, vector<1x8x8x36xbf16>
    %19 = vector.shape_cast %18 : vector<1x8x8x36xbf16> to vector<64x36xbf16>
    %c0_65 = arith.constant 0 : index
    %c0_66 = arith.constant 0 : index
    %20 = vector.load %arg2[%c0_65, %c0_66] : memref<36x8xbf16, #tpu.memory_space<vmem>>, vector<36x8xbf16>
    %cst = arith.constant dense<0.000000e+00> : vector<64x8xf32>
    %21 = tpu.matmul %19, %20, %cst {dimension_numbers = #tpu.dot_dimension_numbers<[1], [0], [0], [1], [0, 0, 1, 1], [], []>} : vector<64x36xbf16>, vector<36x8xbf16>, vector<64x8xf32> -> vector<64x8xf32>
    %c0_67 = arith.constant 0 : index
    %c0_68 = arith.constant 0 : index
    %22 = vector.load %arg3[%c0_67, %c0_68] : memref<1x8xf32, #tpu.memory_space<vmem>>, vector<1x8xf32>
    %23 = vector.broadcast %22 : vector<1x8xf32> to vector<64x8xf32>
    %24 = arith.addf %21, %23 : vector<64x8xf32>
    %cst_69 = arith.constant 0.000000e+00 : f32
    %25 = vector.broadcast %cst_69 : f32 to vector<64x8xf32>
    %26 = arith.cmpf ogt, %24, %25 : vector<64x8xf32>
    %cst_70 = arith.constant 0.00999999977 : f32
    %27 = vector.broadcast %cst_70 : f32 to vector<64x8xf32>
    %28 = arith.mulf %27, %24 : vector<64x8xf32>
    %29 = arith.select %26, %24, %28 : vector<64x8xi1>, vector<64x8xf32>
    %cst_71 = arith.constant 0.000000e+00 : bf16
    %30 = vector.broadcast %cst_71 : bf16 to vector<1x1x10x8xbf16>
    %c0_72 = arith.constant 0 : index
    %c0_73 = arith.constant 0 : index
    %c0_74 = arith.constant 0 : index
    %c0_75 = arith.constant 0 : index
    %31 = vector.load %arg8[%c0_72, %c0_73, %c0_74, %c0_75] : memref<1x10x10x8xbf16, #tpu.memory_space<vmem>>, vector<1x1x10x8xbf16>
    tpu.vector_store %arg8[%c0_72, %c0_73, %c0_74, %c0_75], %30 {strides = array<i32>} : memref<1x10x10x8xbf16, #tpu.memory_space<vmem>>, vector<1x1x10x8xbf16>,
    %c0_76 = arith.constant 0 : index
    %c9 = arith.constant 9 : index
    %c0_77 = arith.constant 0 : index
    %c0_78 = arith.constant 0 : index
    %32 = vector.load %arg8[%c0_76, %c9, %c0_77, %c0_78] : memref<1x10x10x8xbf16, #tpu.memory_space<vmem>>, vector<1x1x10x8xbf16>
    tpu.vector_store %arg8[%c0_76, %c9, %c0_77, %c0_78], %30 {strides = array<i32>} : memref<1x10x10x8xbf16, #tpu.memory_space<vmem>>, vector<1x1x10x8xbf16>,
    %cst_79 = arith.constant 0.000000e+00 : bf16
    %33 = vector.broadcast %cst_79 : bf16 to vector<1x10x1x8xbf16>
    %c0_80 = arith.constant 0 : index
    %c0_81 = arith.constant 0 : index
    %c0_82 = arith.constant 0 : index
    %c0_83 = arith.constant 0 : index
    %34 = vector.load %arg8[%c0_80, %c0_81, %c0_82, %c0_83] : memref<1x10x10x8xbf16, #tpu.memory_space<vmem>>, vector<1x10x1x8xbf16>
    tpu.vector_store %arg8[%c0_80, %c0_81, %c0_82, %c0_83], %33 {strides = array<i32>} : memref<1x10x10x8xbf16, #tpu.memory_space<vmem>>, vector<1x10x1x8xbf16>,
    %c0_84 = arith.constant 0 : index
    %c0_85 = arith.constant 0 : index
    %c9_86 = arith.constant 9 : index
    %c0_87 = arith.constant 0 : index
    %35 = vector.load %arg8[%c0_84, %c0_85, %c9_86, %c0_87] : memref<1x10x10x8xbf16, #tpu.memory_space<vmem>>, vector<1x10x1x8xbf16>
    tpu.vector_store %arg8[%c0_84, %c0_85, %c9_86, %c0_87], %33 {strides = array<i32>} : memref<1x10x10x8xbf16, #tpu.memory_space<vmem>>, vector<1x10x1x8xbf16>,
    %36 = vector.shape_cast %29 : vector<64x8xf32> to vector<1x8x8x8xf32>
    %37 = arith.truncf %36 : vector<1x8x8x8xf32> to vector<1x8x8x8xbf16>
    %c0_88 = arith.constant 0 : index
    %c1_89 = arith.constant 1 : index
    %c1_90 = arith.constant 1 : index
    %c0_91 = arith.constant 0 : index
    %38 = vector.load %arg8[%c0_88, %c1_89, %c1_90, %c0_91] : memref<1x10x10x8xbf16, #tpu.memory_space<vmem>>, vector<1x8x8x8xbf16>
    tpu.vector_store %arg8[%c0_88, %c1_89, %c1_90, %c0_91], %37 {strides = array<i32>} : memref<1x10x10x8xbf16, #tpu.memory_space<vmem>>, vector<1x8x8x8xbf16>,
    %c0_92 = arith.constant 0 : index
    %c0_93 = arith.constant 0 : index
    %c0_94 = arith.constant 0 : index
    %c0_95 = arith.constant 0 : index
    %39 = vector.load %arg8[%c0_92, %c0_93, %c0_94, %c0_95] : memref<1x10x10x8xbf16, #tpu.memory_space<vmem>>, vector<1x8x8x8xbf16>
    %c0_96 = arith.constant 0 : index
    %c0_97 = arith.constant 0 : index
    %c0_98 = arith.constant 0 : index
    %c0_99 = arith.constant 0 : index
    %40 = vector.load %arg9[%c0_96, %c0_97, %c0_98, %c0_99] : memref<1x8x8x72xbf16, #tpu.memory_space<vmem>>, vector<1x8x8x8xbf16>
    tpu.vector_store %arg9[%c0_96, %c0_97, %c0_98, %c0_99], %39 {strides = array<i32>} : memref<1x8x8x72xbf16, #tpu.memory_space<vmem>>, vector<1x8x8x8xbf16>,
    %c0_100 = arith.constant 0 : index
    %c0_101 = arith.constant 0 : index
    %c1_102 = arith.constant 1 : index
    %c0_103 = arith.constant 0 : index
    %41 = vector.load %arg8[%c0_100, %c0_101, %c1_102, %c0_103] : memref<1x10x10x8xbf16, #tpu.memory_space<vmem>>, vector<1x8x8x8xbf16>
    %c0_104 = arith.constant 0 : index
    %c0_105 = arith.constant 0 : index
    %c0_106 = arith.constant 0 : index
    %c8_107 = arith.constant 8 : index
    %42 = vector.load %arg9[%c0_104, %c0_105, %c0_106, %c8_107] : memref<1x8x8x72xbf16, #tpu.memory_space<vmem>>, vector<1x8x8x8xbf16>
    tpu.vector_store %arg9[%c0_104, %c0_105, %c0_106, %c8_107], %41 {strides = array<i32>} : memref<1x8x8x72xbf16, #tpu.memory_space<vmem>>, vector<1x8x8x8xbf16>,
    %c0_108 = arith.constant 0 : index
    %c0_109 = arith.constant 0 : index
    %c2_110 = arith.constant 2 : index
    %c0_111 = arith.constant 0 : index
    %43 = vector.load %arg8[%c0_108, %c0_109, %c2_110, %c0_111] : memref<1x10x10x8xbf16, #tpu.memory_space<vmem>>, vector<1x8x8x8xbf16>
    %c0_112 = arith.constant 0 : index
    %c0_113 = arith.constant 0 : index
    %c0_114 = arith.constant 0 : index
    %c16_115 = arith.constant 16 : index
    %44 = vector.load %arg9[%c0_112, %c0_113, %c0_114, %c16_115] : memref<1x8x8x72xbf16, #tpu.memory_space<vmem>>, vector<1x8x8x8xbf16>
    tpu.vector_store %arg9[%c0_112, %c0_113, %c0_114, %c16_115], %43 {strides = array<i32>} : memref<1x8x8x72xbf16, #tpu.memory_space<vmem>>, vector<1x8x8x8xbf16>,
    %c0_116 = arith.constant 0 : index
    %c1_117 = arith.constant 1 : index
    %c0_118 = arith.constant 0 : index
    %c0_119 = arith.constant 0 : index
    %45 = vector.load %arg8[%c0_116, %c1_117, %c0_118, %c0_119] : memref<1x10x10x8xbf16, #tpu.memory_space<vmem>>, vector<1x8x8x8xbf16>
    %c0_120 = arith.constant 0 : index
    %c0_121 = arith.constant 0 : index
    %c0_122 = arith.constant 0 : index
    %c24_123 = arith.constant 24 : index
    %46 = vector.load %arg9[%c0_120, %c0_121, %c0_122, %c24_123] : memref<1x8x8x72xbf16, #tpu.memory_space<vmem>>, vector<1x8x8x8xbf16>
    tpu.vector_store %arg9[%c0_120, %c0_121, %c0_122, %c24_123], %45 {strides = array<i32>} : memref<1x8x8x72xbf16, #tpu.memory_space<vmem>>, vector<1x8x8x8xbf16>,
    %c0_124 = arith.constant 0 : index
    %c1_125 = arith.constant 1 : index
    %c1_126 = arith.constant 1 : index
    %c0_127 = arith.constant 0 : index
    %47 = vector.load %arg8[%c0_124, %c1_125, %c1_126, %c0_127] : memref<1x10x10x8xbf16, #tpu.memory_space<vmem>>, vector<1x8x8x8xbf16>
    %c0_128 = arith.constant 0 : index
    %c0_129 = arith.constant 0 : index
    %c0_130 = arith.constant 0 : index
    %c32_131 = arith.constant 32 : index
    %48 = vector.load %arg9[%c0_128, %c0_129, %c0_130, %c32_131] : memref<1x8x8x72xbf16, #tpu.memory_space<vmem>>, vector<1x8x8x8xbf16>
    tpu.vector_store %arg9[%c0_128, %c0_129, %c0_130, %c32_131], %47 {strides = array<i32>} : memref<1x8x8x72xbf16, #tpu.memory_space<vmem>>, vector<1x8x8x8xbf16>,
    %c0_132 = arith.constant 0 : index
    %c1_133 = arith.constant 1 : index
    %c2_134 = arith.constant 2 : index
    %c0_135 = arith.constant 0 : index
    %49 = vector.load %arg8[%c0_132, %c1_133, %c2_134, %c0_135] : memref<1x10x10x8xbf16, #tpu.memory_space<vmem>>, vector<1x8x8x8xbf16>
    %c0_136 = arith.constant 0 : index
    %c0_137 = arith.constant 0 : index
    %c0_138 = arith.constant 0 : index
    %c40 = arith.constant 40 : index
    %50 = vector.load %arg9[%c0_136, %c0_137, %c0_138, %c40] : memref<1x8x8x72xbf16, #tpu.memory_space<vmem>>, vector<1x8x8x8xbf16>
    tpu.vector_store %arg9[%c0_136, %c0_137, %c0_138, %c40], %49 {strides = array<i32>} : memref<1x8x8x72xbf16, #tpu.memory_space<vmem>>, vector<1x8x8x8xbf16>,
    %c0_139 = arith.constant 0 : index
    %c2_140 = arith.constant 2 : index
    %c0_141 = arith.constant 0 : index
    %c0_142 = arith.constant 0 : index
    %51 = vector.load %arg8[%c0_139, %c2_140, %c0_141, %c0_142] : memref<1x10x10x8xbf16, #tpu.memory_space<vmem>>, vector<1x8x8x8xbf16>
    %c0_143 = arith.constant 0 : index
    %c0_144 = arith.constant 0 : index
    %c0_145 = arith.constant 0 : index
    %c48 = arith.constant 48 : index
    %52 = vector.load %arg9[%c0_143, %c0_144, %c0_145, %c48] : memref<1x8x8x72xbf16, #tpu.memory_space<vmem>>, vector<1x8x8x8xbf16>
    tpu.vector_store %arg9[%c0_143, %c0_144, %c0_145, %c48], %51 {strides = array<i32>} : memref<1x8x8x72xbf16, #tpu.memory_space<vmem>>, vector<1x8x8x8xbf16>,
    %c0_146 = arith.constant 0 : index
    %c2_147 = arith.constant 2 : index
    %c1_148 = arith.constant 1 : index
    %c0_149 = arith.constant 0 : index
    %53 = vector.load %arg8[%c0_146, %c2_147, %c1_148, %c0_149] : memref<1x10x10x8xbf16, #tpu.memory_space<vmem>>, vector<1x8x8x8xbf16>
    %c0_150 = arith.constant 0 : index
    %c0_151 = arith.constant 0 : index
    %c0_152 = arith.constant 0 : index
    %c56 = arith.constant 56 : index
    %54 = vector.load %arg9[%c0_150, %c0_151, %c0_152, %c56] : memref<1x8x8x72xbf16, #tpu.memory_space<vmem>>, vector<1x8x8x8xbf16>
    tpu.vector_store %arg9[%c0_150, %c0_151, %c0_152, %c56], %53 {strides = array<i32>} : memref<1x8x8x72xbf16, #tpu.memory_space<vmem>>, vector<1x8x8x8xbf16>,
    %c0_153 = arith.constant 0 : index
    %c2_154 = arith.constant 2 : index
    %c2_155 = arith.constant 2 : index
    %c0_156 = arith.constant 0 : index
    %55 = vector.load %arg8[%c0_153, %c2_154, %c2_155, %c0_156] : memref<1x10x10x8xbf16, #tpu.memory_space<vmem>>, vector<1x8x8x8xbf16>
    %c0_157 = arith.constant 0 : index
    %c0_158 = arith.constant 0 : index
    %c0_159 = arith.constant 0 : index
    %c64 = arith.constant 64 : index
    %56 = vector.load %arg9[%c0_157, %c0_158, %c0_159, %c64] : memref<1x8x8x72xbf16, #tpu.memory_space<vmem>>, vector<1x8x8x8xbf16>
    tpu.vector_store %arg9[%c0_157, %c0_158, %c0_159, %c64], %55 {strides = array<i32>} : memref<1x8x8x72xbf16, #tpu.memory_space<vmem>>, vector<1x8x8x8xbf16>,
    %c0_160 = arith.constant 0 : index
    %c0_161 = arith.constant 0 : index
    %c0_162 = arith.constant 0 : index
    %c0_163 = arith.constant 0 : index
    %57 = vector.load %arg9[%c0_160, %c0_161, %c0_162, %c0_163] : memref<1x8x8x72xbf16, #tpu.memory_space<vmem>>, vector<1x8x8x72xbf16>
    %58 = vector.shape_cast %57 : vector<1x8x8x72xbf16> to vector<64x72xbf16>
    %c0_164 = arith.constant 0 : index
    %c0_165 = arith.constant 0 : index
    %59 = vector.load %arg4[%c0_164, %c0_165] : memref<72x8xbf16, #tpu.memory_space<vmem>>, vector<72x8xbf16>
    %cst_166 = arith.constant dense<0.000000e+00> : vector<64x8xf32>
    %60 = tpu.matmul %58, %59, %cst_166 {dimension_numbers = #tpu.dot_dimension_numbers<[1], [0], [0], [1], [0, 0, 1, 1], [], []>} : vector<64x72xbf16>, vector<72x8xbf16>, vector<64x8xf32> -> vector<64x8xf32>
    %c0_167 = arith.constant 0 : index
    %c0_168 = arith.constant 0 : index
    %61 = vector.load %arg5[%c0_167, %c0_168] : memref<1x8xf32, #tpu.memory_space<vmem>>, vector<1x8xf32>
    %62 = vector.broadcast %61 : vector<1x8xf32> to vector<64x8xf32>
    %63 = arith.addf %60, %62 : vector<64x8xf32>
    %cst_169 = arith.constant 0.000000e+00 : f32
    %64 = vector.broadcast %cst_169 : f32 to vector<64x8xf32>
    %65 = arith.cmpf ogt, %63, %64 : vector<64x8xf32>
    %cst_170 = arith.constant 0.00999999977 : f32
    %66 = vector.broadcast %cst_170 : f32 to vector<64x8xf32>
    %67 = arith.mulf %66, %63 : vector<64x8xf32>
    %68 = arith.select %65, %63, %67 : vector<64x8xi1>, vector<64x8xf32>
    %c0_171 = arith.constant 0 : index
    %c0_172 = arith.constant 0 : index
    %c0_173 = arith.constant 0 : index
    %69 = vector.load %arg6[%c0_171, %c0_172, %c0_173] : memref<1x64x8xf32, #tpu.memory_space<vmem>>, vector<1x64x8xf32>
    %70 = vector.shape_cast %69 : vector<1x64x8xf32> to vector<64x8xf32>
    %71 = vector.shape_cast %68 : vector<64x8xf32> to vector<1x64x8xf32>
    tpu.vector_store %arg6[%c0_171, %c0_172, %c0_173], %71 {strides = array<i32>} : memref<1x64x8xf32, #tpu.memory_space<vmem>>, vector<1x64x8xf32>,
    return
  }
  func.func @transform_0(%arg0: i32) -> (i32, i32, i32, i32) {
    %c0_i32 = arith.constant 0 : i32
    %c0_i32_0 = arith.constant 0 : i32
    %c0_i32_1 = arith.constant 0 : i32
    %c0_i32_2 = arith.constant 0 : i32
    return %arg0, %c0_i32, %c0_i32_0, %c0_i32_1 : i32, i32, i32, i32
  }
  func.func @transform_1(%arg0: i32) -> (i32, i32) {
    %c0_i32 = arith.constant 0 : i32
    %c0_i32_0 = arith.constant 0 : i32
    %c0_i32_1 = arith.constant 0 : i32
    return %c0_i32, %c0_i32_0 : i32, i32
  }
  func.func @transform_2(%arg0: i32) -> (i32, i32) {
    %c0_i32 = arith.constant 0 : i32
    %c0_i32_0 = arith.constant 0 : i32
    %c0_i32_1 = arith.constant 0 : i32
    return %c0_i32, %c0_i32_0 : i32, i32
  }
  func.func @transform_3(%arg0: i32) -> (i32, i32) {
    %c0_i32 = arith.constant 0 : i32
    %c0_i32_0 = arith.constant 0 : i32
    %c0_i32_1 = arith.constant 0 : i32
    return %c0_i32, %c0_i32_0 : i32, i32
  }
  func.func @transform_4(%arg0: i32) -> (i32, i32) {
    %c0_i32 = arith.constant 0 : i32
    %c0_i32_0 = arith.constant 0 : i32
    %c0_i32_1 = arith.constant 0 : i32
    return %c0_i32, %c0_i32_0 : i32, i32
  }
  func.func @transform_5(%arg0: i32) -> (i32, i32, i32) {
    %c0_i32 = arith.constant 0 : i32
    %c0_i32_0 = arith.constant 0 : i32
    %c0_i32_1 = arith.constant 0 : i32
    return %arg0, %c0_i32, %c0_i32_0 : i32, i32, i32
  }
}

</mosaic_0001>

<llo_original>
// kernel: down_forward.1
$region0: #{down_forward.1}
  #allocation0 [shape = 'u32[]', space=smem, size = 0x4, offset = 0x4, fixed_abs, tag = 'smem constant byte address 0x4 - core index']
  #allocation1 [shape = 'u32[144,128]{1,0:T(1,128)}', space=vmem, size = 0x12000, scoped, tag = 'internal scratch']
  #allocation2 [shape = 'bf16[1,8,8,36]{3,2,1,0:T(8,128)(2,1)}', space=vmem, size = 0x4000, scoped, tag = 'scratch operand']
  #allocation3 [shape = 'bf16[1,10,10,8]{3,2,1,0:T(8,128)(2,1)}', space=vmem, size = 0xa000, scoped, tag = 'scratch operand']
  #allocation4 [shape = 'bf16[1,8,8,72]{3,2,1,0:T(8,128)(2,1)}', space=vmem, size = 0x4000, scoped, tag = 'scratch operand']
  %s0 = inlined_call_operand.vmem [shape: bf16[2,10,10,4], index: 0, kind: input, shape index: {}]
  %s1 = inlined_call_operand.vmem [shape: bf16[36,8], index: 1, kind: input, shape index: {}]
  %s2 = inlined_call_operand.vmem [shape: f32[1,8], index: 2, kind: input, shape index: {}]
  %s3 = inlined_call_operand.vmem [shape: bf16[72,8], index: 3, kind: input, shape index: {}]
  %s4 = inlined_call_operand.vmem [shape: f32[1,8], index: 4, kind: input, shape index: {}]
  %s5 = inlined_call_operand.vmem [shape: f32[2,64,8], index: 5, kind: output, shape index: {}]
  %s6 = sld [smem:[#allocation0]]
  $region53: #{down_forward.1} parent=0
    _
  %s8 = ssub.s32 1, %s6
  %s9 = scalar_select 0, %s8, %s6
  loop: start=0, step=1, limit=4
  $region2: #{down_forward.1} parent=0 // loop_pre_header
    _
  $region3: #{down_forward.1} parent=0 // loop_header
    %s11 = sphi 0, %s15
    %p12 = scmp.ge.s32.totalorder %s11, 4
    %s21 = sphi 0, %s23
    %s24 = sphi 0, %s21
    %s25 = sphi 0, %s24
    %s41 = sphi 0, %s25
    %s45 = sphi 0, %s45
    %s47 = sphi 0, %s45
    %s48 = sphi 0, %s47
    %s62 = sphi 0, %s48
    %s66 = sphi 0, %s66
    %s68 = sphi 0, %s66
    %s69 = sphi 0, %s68
    %s83 = sphi 0, %s69
    %s87 = sphi 0, %s87
    %s89 = sphi 0, %s87
    %s90 = sphi 0, %s89
    %s104 = sphi 0, %s90
    %s108 = sphi 0, %s108
    %s110 = sphi 0, %s108
    %s111 = sphi 0, %s110
    %s125 = sphi 0, %s111
    %s131 = sphi 0, %s133
    %s134 = sphi 0, %s131
    %s135 = sphi 0, %s134
    %s151 = sphi 0, %s135
  $region4: #{down_forward.1} parent=0 // loop_header_branch
    %14 = sbr.rel (%p12) target = $region8
  $region5: #{down_forward.1} parent=0 // loop_body
    %s16 = ssub.s32 %s11, 1
    %s17 = ssub.s32 %s11, 2
    %s18 = sadd.s32 %s11, 1
    %s19 = ssub.s32 %s11, %s18
    %p20 = scmp.eq.s32.totalorder %s19, 0
    %s22 = sadd.s32 %s21, 1
    %s23 = scalar_select %p20, %s21, %s22
    %p26 = pneg %p20
    %p27 = scmp.eq.s32.totalorder %s11, 1
    %p28 = por %p26, %p27
    %p29 = scmp.ne.s32.totalorder %s21, %s24
    %p30 = scmp.eq.s32.totalorder %s11, 0
    %p31 = por %p29, %p30
    %p32 = scmp.ne.s32.totalorder %s21, %s24
    %p33 = scmp.eq.s32.totalorder %s16, 1
    %p34 = por %p32, %p33
    %p35 = scmp.ne.s32.totalorder %s24, %s25
    %p36 = scmp.eq.s32.totalorder %s16, 0
    %p37 = por %p35, %p36
    %p38 = scmp.ne.s32.totalorder %s24, %s25
    %p39 = scmp.eq.s32.totalorder %s17, 1
    %p40 = por %p38, %p39
    %p42 = scmp.ne.s32.totalorder %s25, %s41
    %p43 = scmp.eq.s32.totalorder %s17, 0
    %p44 = por %p42, %p43
    %s46 = sadd.s32 %s45, 1
    %p49 = scmp.eq.s32.totalorder %s11, 1
    %p50 = scmp.ne.s32.totalorder %s45, %s47
    %p51 = scmp.eq.s32.totalorder %s11, 0
    %p52 = por %p50, %p51
    %p53 = scmp.ne.s32.totalorder %s45, %s47
    %p54 = scmp.eq.s32.totalorder %s16, 1
    %p55 = por %p53, %p54
    %p56 = scmp.ne.s32.totalorder %s47, %s48
    %p57 = scmp.eq.s32.totalorder %s16, 0
    %p58 = por %p56, %p57
    %p59 = scmp.ne.s32.totalorder %s47, %s48
    %p60 = scmp.eq.s32.totalorder %s17, 1
    %p61 = por %p59, %p60
    %p63 = scmp.ne.s32.totalorder %s48, %s62
    %p64 = scmp.eq.s32.totalorder %s17, 0
    %p65 = por %p63, %p64
    %s67 = sadd.s32 %s66, 1
    %p70 = scmp.eq.s32.totalorder %s11, 1
    %p71 = scmp.ne.s32.totalorder %s66, %s68
    %p72 = scmp.eq.s32.totalorder %s11, 0
    %p73 = por %p71, %p72
    %p74 = scmp.ne.s32.totalorder %s66, %s68
    %p75 = scmp.eq.s32.totalorder %s16, 1
    %p76 = por %p74, %p75
    %p77 = scmp.ne.s32.totalorder %s68, %s69
    %p78 = scmp.eq.s32.totalorder %s16, 0
    %p79 = por %p77, %p78
    %p80 = scmp.ne.s32.totalorder %s68, %s69
    %p81 = scmp.eq.s32.totalorder %s17, 1
    %p82 = por %p80, %p81
    %p84 = scmp.ne.s32.totalorder %s69, %s83
    %p85 = scmp.eq.s32.totalorder %s17, 0
    %p86 = por %p84, %p85
    %s88 = sadd.s32 %s87, 1
    %p91 = scmp.eq.s32.totalorder %s11, 1
    %p92 = scmp.ne.s32.totalorder %s87, %s89
    %p93 = scmp.eq.s32.totalorder %s11, 0
    %p94 = por %p92, %p93
    %p95 = scmp.ne.s32.totalorder %s87, %s89
    %p96 = scmp.eq.s32.totalorder %s16, 1
    %p97 = por %p95, %p96
    %p98 = scmp.ne.s32.totalorder %s89, %s90
    %p99 = scmp.eq.s32.totalorder %s16, 0
    %p100 = por %p98, %p99
    %p101 = scmp.ne.s32.totalorder %s89, %s90
    %p102 = scmp.eq.s32.totalorder %s17, 1
    %p103 = por %p101, %p102
    %p105 = scmp.ne.s32.totalorder %s90, %s104
    %p106 = scmp.eq.s32.totalorder %s17, 0
    %p107 = por %p105, %p106
    %s109 = sadd.s32 %s108, 1
    %p112 = scmp.eq.s32.totalorder %s11, 1
    %p113 = scmp.ne.s32.totalorder %s108, %s110
    %p114 = scmp.eq.s32.totalorder %s11, 0
    %p115 = por %p113, %p114
    %p116 = scmp.ne.s32.totalorder %s108, %s110
    %p117 = scmp.eq.s32.totalorder %s16, 1
    %p118 = por %p116, %p117
    %p119 = scmp.ne.s32.totalorder %s110, %s111
    %p120 = scmp.eq.s32.totalorder %s16, 0
    %p121 = por %p119, %p120
    %p122 = scmp.ne.s32.totalorder %s110, %s111
    %p123 = scmp.eq.s32.totalorder %s17, 1
    %p124 = por %p122, %p123
    %p126 = scmp.ne.s32.totalorder %s111, %s125
    %p127 = scmp.eq.s32.totalorder %s17, 0
    %p128 = por %p126, %p127
    %s129 = ssub.s32 %s11, %s18
    %p130 = scmp.eq.s32.totalorder %s129, 0
    %s132 = sadd.s32 %s131, 1
    %s133 = scalar_select %p130, %s131, %s132
    %p136 = pneg %p130
    %p137 = scmp.eq.s32.totalorder %s11, 1
    %p138 = por %p136, %p137
    %p139 = scmp.ne.s32.totalorder %s131, %s134
    %p140 = scmp.eq.s32.totalorder %s11, 0
    %p141 = por %p139, %p140
    %p142 = scmp.ne.s32.totalorder %s131, %s134
    %p143 = scmp.eq.s32.totalorder %s16, 1
    %p144 = por %p142, %p143
    %p145 = scmp.ne.s32.totalorder %s134, %s135
    %p146 = scmp.eq.s32.totalorder %s16, 0
    %p147 = por %p145, %p146
    %p148 = scmp.ne.s32.totalorder %s134, %s135
    %p149 = scmp.eq.s32.totalorder %s17, 1
    %p150 = por %p148, %p149
    %p152 = scmp.ne.s32.totalorder %s135, %s151
    %p153 = scmp.eq.s32.totalorder %s17, 0
    %p154 = por %p152, %p153
    %p155 = scmp.le.s32.totalorder 1, %s11
    %p156 = scmp.lt.s32.totalorder %s11, 3
    %p157 = pnand %p155, %p156
    %p158 = pneg %p157
    // Predicated region
    $region9: #{down_forward.1} parent=5 // pred_check
      _
    $region10: #{down_forward.1} parent=5 // pred_check_branch
      %160 = sbr.rel (%p157) target = $region12
    $region11: #{down_forward.1} parent=5 // pred_region
      %s161 = ssub.s32 %s11, 1
      // Predicated region
      $region13: #{down_forward.1} parent=11 // pred_check
        %p162 = pneg %p58
      $region14: #{down_forward.1} parent=11 // pred_check_branch
        %164 = sbr.rel (%p162) target = $region16
      $region15: #{down_forward.1} parent=11 // pred_region
        _
      $region16: #{down_forward.1} parent=11 // pred_fallthru
        _
      // Predicated region
      $region17: #{down_forward.1} parent=11 // pred_check
        %p165 = pneg %p79
      $region18: #{down_forward.1} parent=11 // pred_check_branch
        %167 = sbr.rel (%p165) target = $region20
      $region19: #{down_forward.1} parent=11 // pred_region
        _
      $region20: #{down_forward.1} parent=11 // pred_fallthru
        _
      // Predicated region
      $region21: #{down_forward.1} parent=11 // pred_check
        %p168 = pneg %p100
      $region22: #{down_forward.1} parent=11 // pred_check_branch
        %170 = sbr.rel (%p168) target = $region24
      $region23: #{down_forward.1} parent=11 // pred_region
        _
      $region24: #{down_forward.1} parent=11 // pred_fallthru
        _
      // Predicated region
      $region25: #{down_forward.1} parent=11 // pred_check
        %p171 = pneg %p121
      $region26: #{down_forward.1} parent=11 // pred_check_branch
        %173 = sbr.rel (%p171) target = $region28
      $region27: #{down_forward.1} parent=11 // pred_region
        _
      $region28: #{down_forward.1} parent=11 // pred_fallthru
        _
    $region12: #{down_forward.1} parent=5 // pred_fallthru
      _
    %p174 = scmp.lt.s32.totalorder %s11, 2
    // Predicated region
    $region29: #{down_forward.1} parent=5 // pred_check
      %p175 = pneg %p174
    $region30: #{down_forward.1} parent=5 // pred_check_branch
      %177 = sbr.rel (%p175) target = $region32
    $region31: #{down_forward.1} parent=5 // pred_region
      // Predicated region
      $region33: #{down_forward.1} parent=31 // pred_check
        %p178 = pneg %p31
      $region34: #{down_forward.1} parent=31 // pred_check_branch
        %180 = sbr.rel (%p178) target = $region36
      $region35: #{down_forward.1} parent=31 // pred_region
        %p181 = scmp.lt.s32.totalorder %s11, 1
        %s182 = scalar_select %p181, %s11, 1
        %s183 = smul.addr %s182, 20
        %s184 = smul.addr %s183, 4
        %s185 = scalar_lea.vmem %s0, %s184
      $region36: #{down_forward.1} parent=31 // pred_fallthru
        _
    $region32: #{down_forward.1} parent=5 // pred_fallthru
      _
    %p186 = scmp.le.s32.totalorder 1, %s11
    %p187 = scmp.lt.s32.totalorder %s11, 3
    %p188 = pnand %p186, %p187
    %p189 = pneg %p188
    // Predicated region
    $region37: #{down_forward.1} parent=5 // pred_check
      _
    $region38: #{down_forward.1} parent=5 // pred_check_branch
      %191 = sbr.rel (%p188) target = $region40
    $region39: #{down_forward.1} parent=5 // pred_region
      %s192 = ssub.s32 %s11, 1
      %p193 = scmp.lt.s32.totalorder %s16, 1
      %s194 = scalar_select %p193, %s16, 1
      %s195 = smul.addr %s194, 20
      %s196 = smul.addr %s195, 4
      %s197 = scalar_lea.vmem %s0, %s196
      %p198 = pneg %p37
      %p199 = pneg %p34
      %p200 = pneg %p58
      %p201 = pneg %p55
      %p202 = pneg %p79
      %p203 = pneg %p76
      %p204 = pneg %p100
      %p205 = pneg %p97
      %p206 = pneg %p121
      %p207 = pneg %p118
      %p208 = pneg %p147
      %p209 = pneg %p144
      %p210 = scmp.lt.s32.totalorder %s16, 1
      %s211 = scalar_select %p210, %s16, 1
      %s212 = smul.addr %s211, 8
      %s213 = smul.addr %s212, 8
      %s214 = scalar_lea.vmem %s5, %s213
      %p215 = scmp.lt.s32.totalorder %s16, 1
      %s216 = scalar_select %p215, %s16, 1
      %s217 = smul.addr %s216, 20
      %s218 = smul.addr %s217, 4
      %s219 = scalar_lea.vmem %s0, %s218
      %p220 = scmp.lt.s32.totalorder %s16, 1
      %s221 = scalar_select %p220, %s16, 1
      %s222 = smul.addr %s221, 8
      %s223 = smul.addr %s222, 8
      %s224 = scalar_lea.vmem %s5, %s223
      %v226 = vld [vmem:[%s219] sm:$0xf]
      %v227 = vld [vmem:[%s219 + $0x8] sm:$0xf]
      %v228 = vld [vmem:[%s219 + $0x10] sm:$0xf]
      %v229 = vld [vmem:[%s219 + $0x18] sm:$0xf]
      %v230 = vld [vmem:[%s219 + $0x20] sm:$0xf]
      %v231 = vld [vmem:[%s219 + $0x28] sm:$0xf]
      %v232 = vld [vmem:[%s219 + $0x30] sm:$0xf]
      %v233 = vld [vmem:[%s219 + $0x38] sm:$0xf]
      %vm234 = vcmask 27648
      %235 = vst.msk [vmem:[#allocation2] sm:$0xf] %vm234, %v226
      %236 = vst.msk [vmem:[#allocation2 + $0x4] sm:$0xf] %vm234, %v227
      %237 = vst.msk [vmem:[#allocation2 + $0x8] sm:$0xf] %vm234, %v228
      %238 = vst.msk [vmem:[#allocation2 + $0xc] sm:$0xf] %vm234, %v229
      %239 = vst.msk [vmem:[#allocation2 + $0x10] sm:$0xf] %vm234, %v230
      %240 = vst.msk [vmem:[#allocation2 + $0x14] sm:$0xf] %vm234, %v231
      %241 = vst.msk [vmem:[#allocation2 + $0x18] sm:$0xf] %vm234, %v232
      %242 = vst.msk [vmem:[#allocation2 + $0x1c] sm:$0xf] %vm234, %v233
      %v243 = vld [vmem:[%s219] sm:$0xf]
      %v244 = vld [vmem:[%s219 + $0x4] sm:$0x1]
      %v245 = vld [vmem:[%s219 + $0x8] sm:$0xf]
      %v246 = vld [vmem:[%s219 + $0xc] sm:$0x1]
      %v247 = vld [vmem:[%s219 + $0x10] sm:$0xf]
      %v248 = vld [vmem:[%s219 + $0x14] sm:$0x1]
      %v249 = vld [vmem:[%s219 + $0x18] sm:$0xf]
      %v250 = vld [vmem:[%s219 + $0x1c] sm:$0x1]
      %v251 = vld [vmem:[%s219 + $0x20] sm:$0xf]
      %v252 = vld [vmem:[%s219 + $0x24] sm:$0x1]
      %v253 = vld [vmem:[%s219 + $0x28] sm:$0xf]
      %v254 = vld [vmem:[%s219 + $0x2c] sm:$0x1]
      %v255 = vld [vmem:[%s219 + $0x30] sm:$0xf]
      %v256 = vld [vmem:[%s219 + $0x34] sm:$0x1]
      %v257 = vld [vmem:[%s219 + $0x38] sm:$0xf]
      %v258 = vld [vmem:[%s219 + $0x3c] sm:$0x1]
      %vm259 = vsmask.f32 3328
      %vm260 = vsmask.f32 7440
      %vm261 = vmor %vm259, %vm260
      %v263 = vshrl.u32 %v243, 16
      %v265 = vrot.slane %v263, 4
      %v266 = vshll.u32 %v243, 16
      %v268 = vrot.slane %v266, 5
      %v269 = vor.u32 %v265, %v268
      %v270 = vrot.slane %v269, 4
      %v272 = vshll.u32 %v244, 16
      %v274 = vrot.slane %v272, 5
      %v275 = vsel %vm261, %v270, %v274
      %v277 = vshrl.u32 %v245, 16
      %v279 = vrot.slane %v277, 4
      %v280 = vshll.u32 %v245, 16
      %v282 = vrot.slane %v280, 5
      %v283 = vor.u32 %v279, %v282
      %v284 = vrot.slane %v283, 4
      %v286 = vshll.u32 %v246, 16
      %v288 = vrot.slane %v286, 5
      %v289 = vsel %vm261, %v284, %v288
      %v291 = vshrl.u32 %v247, 16
      %v293 = vrot.slane %v291, 4
      %v294 = vshll.u32 %v247, 16
      %v296 = vrot.slane %v294, 5
      %v297 = vor.u32 %v293, %v296
      %v298 = vrot.slane %v297, 4
      %v300 = vshll.u32 %v248, 16
      %v302 = vrot.slane %v300, 5
      %v303 = vsel %vm261, %v298, %v302
      %v305 = vshrl.u32 %v249, 16
      %v307 = vrot.slane %v305, 4
      %v308 = vshll.u32 %v249, 16
      %v310 = vrot.slane %v308, 5
      %v311 = vor.u32 %v307, %v310
      %v312 = vrot.slane %v311, 4
      %v314 = vshll.u32 %v250, 16
      %v316 = vrot.slane %v314, 5
      %v317 = vsel %vm261, %v312, %v316
      %v319 = vshrl.u32 %v251, 16
      %v321 = vrot.slane %v319, 4
      %v322 = vshll.u32 %v251, 16
      %v324 = vrot.slane %v322, 5
      %v325 = vor.u32 %v321, %v324
      %v326 = vrot.slane %v325, 4
      %v328 = vshll.u32 %v252, 16
      %v330 = vrot.slane %v328, 5
      %v331 = vsel %vm261, %v326, %v330
      %v333 = vshrl.u32 %v253, 16
      %v335 = vrot.slane %v333, 4
      %v336 = vshll.u32 %v253, 16
      %v338 = vrot.slane %v336, 5
      %v339 = vor.u32 %v335, %v338
      %v340 = vrot.slane %v339, 4
      %v342 = vshll.u32 %v254, 16
      %v344 = vrot.slane %v342, 5
      %v345 = vsel %vm261, %v340, %v344
      %v347 = vshrl.u32 %v255, 16
      %v349 = vrot.slane %v347, 4
      %v350 = vshll.u32 %v255, 16
      %v352 = vrot.slane %v350, 5
      %v353 = vor.u32 %v349, %v352
      %v354 = vrot.slane %v353, 4
      %v356 = vshll.u32 %v256, 16
      %v358 = vrot.slane %v356, 5
      %v359 = vsel %vm261, %v354, %v358
      %v361 = vshrl.u32 %v257, 16
      %v363 = vrot.slane %v361, 4
      %v364 = vshll.u32 %v257, 16
      %v366 = vrot.slane %v364, 5
      %v367 = vor.u32 %v363, %v366
      %v368 = vrot.slane %v367, 4
      %v370 = vshll.u32 %v258, 16
      %v372 = vrot.slane %v370, 5
      %v373 = vsel %vm261, %v368, %v372
      %374 = vrot.lane.b32.xlu0 %v275, 4
      %v375 = vpop.permute.xlu0 %374
      %376 = vrot.lane.b32.xlu0 %v289, 4
      %v377 = vpop.permute.xlu0 %376
      %378 = vrot.lane.b32.xlu0 %v303, 4
      %v379 = vpop.permute.xlu0 %378
      %380 = vrot.lane.b32.xlu0 %v317, 4
      %v381 = vpop.permute.xlu0 %380
      %382 = vrot.lane.b32.xlu0 %v331, 4
      %v383 = vpop.permute.xlu0 %382
      %384 = vrot.lane.b32.xlu0 %v345, 4
      %v385 = vpop.permute.xlu0 %384
      %386 = vrot.lane.b32.xlu0 %v359, 4
      %v387 = vpop.permute.xlu0 %386
      %388 = vrot.lane.b32.xlu0 %v373, 4
      %v389 = vpop.permute.xlu0 %388
      %vm398 = vcmask 60448
      %399 = vst.msk [vmem:[#allocation2] sm:$0xf] %vm398, %v375
      %400 = vst.msk [vmem:[#allocation2 + $0x4] sm:$0xf] %vm398, %v377
      %401 = vst.msk [vmem:[#allocation2 + $0x8] sm:$0xf] %vm398, %v379
      %402 = vst.msk [vmem:[#allocation2 + $0xc] sm:$0xf] %vm398, %v381
      %403 = vst.msk [vmem:[#allocation2 + $0x10] sm:$0xf] %vm398, %v383
      %404 = vst.msk [vmem:[#allocation2 + $0x14] sm:$0xf] %vm398, %v385
      %405 = vst.msk [vmem:[#allocation2 + $0x18] sm:$0xf] %vm398, %v387
      %406 = vst.msk [vmem:[#allocation2 + $0x1c] sm:$0xf] %vm398, %v389
      %v407 = vld [vmem:[%s219] sm:$0xe]
      %v408 = vld [vmem:[%s219 + $0x4] sm:$0x1]
      %v409 = vld [vmem:[%s219 + $0x8] sm:$0xe]
      %v410 = vld [vmem:[%s219 + $0xc] sm:$0x1]
      %v411 = vld [vmem:[%s219 + $0x10] sm:$0xe]
      %v412 = vld [vmem:[%s219 + $0x14] sm:$0x1]
      %v413 = vld [vmem:[%s219 + $0x18] sm:$0xe]
      %v414 = vld [vmem:[%s219 + $0x1c] sm:$0x1]
      %v415 = vld [vmem:[%s219 + $0x20] sm:$0xe]
      %v416 = vld [vmem:[%s219 + $0x24] sm:$0x1]
      %v417 = vld [vmem:[%s219 + $0x28] sm:$0xe]
      %v418 = vld [vmem:[%s219 + $0x2c] sm:$0x1]
      %v419 = vld [vmem:[%s219 + $0x30] sm:$0xe]
      %v420 = vld [vmem:[%s219 + $0x34] sm:$0x1]
      %v421 = vld [vmem:[%s219 + $0x38] sm:$0xe]
      %v422 = vld [vmem:[%s219 + $0x3c] sm:$0x1]
      %vm439 = vcmask 1042432
      %vm440 = vcmask 1046532
      %vm441 = vmor %vm439, %vm440
      %v442 = vrot.slane %v407, 5
      %v443 = vrot.slane %v442, 4
      %v444 = vrot.slane %v408, 5
      %v445 = vsel %vm441, %v443, %v444
      %v446 = vrot.slane %v409, 5
      %v447 = vrot.slane %v446, 4
      %v448 = vrot.slane %v410, 5
      %v449 = vsel %vm441, %v447, %v448
      %v450 = vrot.slane %v411, 5
      %v451 = vrot.slane %v450, 4
      %v452 = vrot.slane %v412, 5
      %v453 = vsel %vm441, %v451, %v452
      %v454 = vrot.slane %v413, 5
      %v455 = vrot.slane %v454, 4
      %v456 = vrot.slane %v414, 5
      %v457 = vsel %vm441, %v455, %v456
      %v458 = vrot.slane %v415, 5
      %v459 = vrot.slane %v458, 4
      %v460 = vrot.slane %v416, 5
      %v461 = vsel %vm441, %v459, %v460
      %v462 = vrot.slane %v417, 5
      %v463 = vrot.slane %v462, 4
      %v464 = vrot.slane %v418, 5
      %v465 = vsel %vm441, %v463, %v464
      %v466 = vrot.slane %v419, 5
      %v467 = vrot.slane %v466, 4
      %v468 = vrot.slane %v420, 5
      %v469 = vsel %vm441, %v467, %v468
      %v470 = vrot.slane %v421, 5
      %v471 = vrot.slane %v470, 4
      %v472 = vrot.slane %v422, 5
      %v473 = vsel %vm441, %v471, %v472
      %474 = vrot.lane.b32.xlu0 %v445, 8
      %v475 = vpop.permute.xlu0 %474
      %476 = vrot.lane.b32.xlu0 %v449, 8
      %v477 = vpop.permute.xlu0 %476
      %478 = vrot.lane.b32.xlu0 %v453, 8
      %v479 = vpop.permute.xlu0 %478
      %480 = vrot.lane.b32.xlu0 %v457, 8
      %v481 = vpop.permute.xlu0 %480
      %482 = vrot.lane.b32.xlu0 %v461, 8
      %v483 = vpop.permute.xlu0 %482
      %484 = vrot.lane.b32.xlu0 %v465, 8
      %v485 = vpop.permute.xlu0 %484
      %486 = vrot.lane.b32.xlu0 %v469, 8
      %v487 = vpop.permute.xlu0 %486
      %488 = vrot.lane.b32.xlu0 %v473, 8
      %v489 = vpop.permute.xlu0 %488
      %vm498 = vcmask 93248
      %499 = vst.msk [vmem:[#allocation2] sm:$0xf] %vm498, %v475
      %500 = vst.msk [vmem:[#allocation2 + $0x4] sm:$0xf] %vm498, %v477
      %501 = vst.msk [vmem:[#allocation2 + $0x8] sm:$0xf] %vm498, %v479
      %502 = vst.msk [vmem:[#allocation2 + $0xc] sm:$0xf] %vm498, %v481
      %503 = vst.msk [vmem:[#allocation2 + $0x10] sm:$0xf] %vm498, %v483
      %504 = vst.msk [vmem:[#allocation2 + $0x14] sm:$0xf] %vm498, %v485
      %505 = vst.msk [vmem:[#allocation2 + $0x18] sm:$0xf] %vm498, %v487
      %506 = vst.msk [vmem:[#allocation2 + $0x1c] sm:$0xf] %vm498, %v489
      %s507 = scalar_lea.vmem %s219, 8
      %v508 = vld [vmem:[%s507] sm:$0xf]
      %v509 = vld [vmem:[%s507 + $0x8] sm:$0xf]
      %v510 = vld [vmem:[%s507 + $0x10] sm:$0xf]
      %v511 = vld [vmem:[%s507 + $0x18] sm:$0xf]
      %v512 = vld [vmem:[%s507 + $0x20] sm:$0xf]
      %v513 = vld [vmem:[%s507 + $0x28] sm:$0xf]
      %v514 = vld [vmem:[%s507 + $0x30] sm:$0xf]
      %v515 = vld [vmem:[%s507 + $0x38] sm:$0xf]
      %524 = vrot.lane.b32.xlu0 %v508, 12
      %v525 = vpop.permute.xlu0 %524
      %526 = vrot.lane.b32.xlu0 %v509, 12
      %v527 = vpop.permute.xlu0 %526
      %528 = vrot.lane.b32.xlu0 %v510, 12
      %v529 = vpop.permute.xlu0 %528
      %530 = vrot.lane.b32.xlu0 %v511, 12
      %v531 = vpop.permute.xlu0 %530
      %532 = vrot.lane.b32.xlu0 %v512, 12
      %v533 = vpop.permute.xlu0 %532
      %534 = vrot.lane.b32.xlu0 %v513, 12
      %v535 = vpop.permute.xlu0 %534
      %536 = vrot.lane.b32.xlu0 %v514, 12
      %v537 = vpop.permute.xlu0 %536
      %538 = vrot.lane.b32.xlu0 %v515, 12
      %v539 = vpop.permute.xlu0 %538
      %vm548 = vcmask 126048
      %549 = vst.msk [vmem:[#allocation2] sm:$0xf] %vm548, %v525
      %550 = vst.msk [vmem:[#allocation2 + $0x4] sm:$0xf] %vm548, %v527
      %551 = vst.msk [vmem:[#allocation2 + $0x8] sm:$0xf] %vm548, %v529
      %552 = vst.msk [vmem:[#allocation2 + $0xc] sm:$0xf] %vm548, %v531
      %553 = vst.msk [vmem:[#allocation2 + $0x10] sm:$0xf] %vm548, %v533
      %554 = vst.msk [vmem:[#allocation2 + $0x14] sm:$0xf] %vm548, %v535
      %555 = vst.msk [vmem:[#allocation2 + $0x18] sm:$0xf] %vm548, %v537
      %556 = vst.msk [vmem:[#allocation2 + $0x1c] sm:$0xf] %vm548, %v539
      %v557 = vld [vmem:[%s507] sm:$0xf]
      %v558 = vld [vmem:[%s507 + $0x4] sm:$0x1]
      %v559 = vld [vmem:[%s507 + $0x8] sm:$0xf]
      %v560 = vld [vmem:[%s507 + $0xc] sm:$0x1]
      %v561 = vld [vmem:[%s507 + $0x10] sm:$0xf]
      %v562 = vld [vmem:[%s507 + $0x14] sm:$0x1]
      %v563 = vld [vmem:[%s507 + $0x18] sm:$0xf]
      %v564 = vld [vmem:[%s507 + $0x1c] sm:$0x1]
      %v565 = vld [vmem:[%s507 + $0x20] sm:$0xf]
      %v566 = vld [vmem:[%s507 + $0x24] sm:$0x1]
      %v567 = vld [vmem:[%s507 + $0x28] sm:$0xf]
      %v568 = vld [vmem:[%s507 + $0x2c] sm:$0x1]
      %v569 = vld [vmem:[%s507 + $0x30] sm:$0xf]
      %v570 = vld [vmem:[%s507 + $0x34] sm:$0x1]
      %v571 = vld [vmem:[%s507 + $0x38] sm:$0xf]
      %v572 = vld [vmem:[%s507 + $0x3c] sm:$0x1]
      %v574 = vshrl.u32 %v557, 16
      %v576 = vrot.slane %v574, 4
      %v577 = vshll.u32 %v557, 16
      %v579 = vrot.slane %v577, 5
      %v580 = vor.u32 %v576, %v579
      %v581 = vrot.slane %v580, 4
      %v583 = vshll.u32 %v558, 16
      %v585 = vrot.slane %v583, 5
      %v586 = vsel %vm261, %v581, %v585
      %v588 = vshrl.u32 %v559, 16
      %v590 = vrot.slane %v588, 4
      %v591 = vshll.u32 %v559, 16
      %v593 = vrot.slane %v591, 5
      %v594 = vor.u32 %v590, %v593
      %v595 = vrot.slane %v594, 4
      %v597 = vshll.u32 %v560, 16
      %v599 = vrot.slane %v597, 5
      %v600 = vsel %vm261, %v595, %v599
      %v602 = vshrl.u32 %v561, 16
      %v604 = vrot.slane %v602, 4
      %v605 = vshll.u32 %v561, 16
      %v607 = vrot.slane %v605, 5
      %v608 = vor.u32 %v604, %v607
      %v609 = vrot.slane %v608, 4
      %v611 = vshll.u32 %v562, 16
      %v613 = vrot.slane %v611, 5
      %v614 = vsel %vm261, %v609, %v613
      %v616 = vshrl.u32 %v563, 16
      %v618 = vrot.slane %v616, 4
      %v619 = vshll.u32 %v563, 16
      %v621 = vrot.slane %v619, 5
      %v622 = vor.u32 %v618, %v621
      %v623 = vrot.slane %v622, 4
      %v625 = vshll.u32 %v564, 16
      %v627 = vrot.slane %v625, 5
      %v628 = vsel %vm261, %v623, %v627
      %v630 = vshrl.u32 %v565, 16
      %v632 = vrot.slane %v630, 4
      %v633 = vshll.u32 %v565, 16
      %v635 = vrot.slane %v633, 5
      %v636 = vor.u32 %v632, %v635
      %v637 = vrot.slane %v636, 4
      %v639 = vshll.u32 %v566, 16
      %v641 = vrot.slane %v639, 5
      %v642 = vsel %vm261, %v637, %v641
      %v644 = vshrl.u32 %v567, 16
      %v646 = vrot.slane %v644, 4
      %v647 = vshll.u32 %v567, 16
      %v649 = vrot.slane %v647, 5
      %v650 = vor.u32 %v646, %v649
      %v651 = vrot.slane %v650, 4
      %v653 = vshll.u32 %v568, 16
      %v655 = vrot.slane %v653, 5
      %v656 = vsel %vm261, %v651, %v655
      %v658 = vshrl.u32 %v569, 16
      %v660 = vrot.slane %v658, 4
      %v661 = vshll.u32 %v569, 16
      %v663 = vrot.slane %v661, 5
      %v664 = vor.u32 %v660, %v663
      %v665 = vrot.slane %v664, 4
      %v667 = vshll.u32 %v570, 16
      %v669 = vrot.slane %v667, 5
      %v670 = vsel %vm261, %v665, %v669
      %v672 = vshrl.u32 %v571, 16
      %v674 = vrot.slane %v672, 4
      %v675 = vshll.u32 %v571, 16
      %v677 = vrot.slane %v675, 5
      %v678 = vor.u32 %v674, %v677
      %v679 = vrot.slane %v678, 4
      %v681 = vshll.u32 %v572, 16
      %v683 = vrot.slane %v681, 5
      %v684 = vsel %vm261, %v679, %v683
      %685 = vrot.lane.b32.xlu0 %v586, 16
      %v686 = vpop.permute.xlu0 %685
      %687 = vrot.lane.b32.xlu0 %v600, 16
      %v688 = vpop.permute.xlu0 %687
      %689 = vrot.lane.b32.xlu0 %v614, 16
      %v690 = vpop.permute.xlu0 %689
      %691 = vrot.lane.b32.xlu0 %v628, 16
      %v692 = vpop.permute.xlu0 %691
      %693 = vrot.lane.b32.xlu0 %v642, 16
      %v694 = vpop.permute.xlu0 %693
      %695 = vrot.lane.b32.xlu0 %v656, 16
      %v696 = vpop.permute.xlu0 %695
      %697 = vrot.lane.b32.xlu0 %v670, 16
      %v698 = vpop.permute.xlu0 %697
      %699 = vrot.lane.b32.xlu0 %v684, 16
      %v700 = vpop.permute.xlu0 %699
      %vm709 = vcmask 158848
      %710 = vst.msk [vmem:[#allocation2] sm:$0xf] %vm709, %v686
      %711 = vst.msk [vmem:[#allocation2 + $0x4] sm:$0xf] %vm709, %v688
      %712 = vst.msk [vmem:[#allocation2 + $0x8] sm:$0xf] %vm709, %v690
      %713 = vst.msk [vmem:[#allocation2 + $0xc] sm:$0xf] %vm709, %v692
      %714 = vst.msk [vmem:[#allocation2 + $0x10] sm:$0xf] %vm709, %v694
      %715 = vst.msk [vmem:[#allocation2 + $0x14] sm:$0xf] %vm709, %v696
      %716 = vst.msk [vmem:[#allocation2 + $0x18] sm:$0xf] %vm709, %v698
      %717 = vst.msk [vmem:[#allocation2 + $0x1c] sm:$0xf] %vm709, %v700
      %v718 = vld [vmem:[%s507] sm:$0xe]
      %v719 = vld [vmem:[%s507 + $0x4] sm:$0x1]
      %v720 = vld [vmem:[%s507 + $0x8] sm:$0xe]
      %v721 = vld [vmem:[%s507 + $0xc] sm:$0x1]
      %v722 = vld [vmem:[%s507 + $0x10] sm:$0xe]
      %v723 = vld [vmem:[%s507 + $0x14] sm:$0x1]
      %v724 = vld [vmem:[%s507 + $0x18] sm:$0xe]
      %v725 = vld [vmem:[%s507 + $0x1c] sm:$0x1]
      %v726 = vld [vmem:[%s507 + $0x20] sm:$0xe]
      %v727 = vld [vmem:[%s507 + $0x24] sm:$0x1]
      %v728 = vld [vmem:[%s507 + $0x28] sm:$0xe]
      %v729 = vld [vmem:[%s507 + $0x2c] sm:$0x1]
      %v730 = vld [vmem:[%s507 + $0x30] sm:$0xe]
      %v731 = vld [vmem:[%s507 + $0x34] sm:$0x1]
      %v732 = vld [vmem:[%s507 + $0x38] sm:$0xe]
      %v733 = vld [vmem:[%s507 + $0x3c] sm:$0x1]
      %v750 = vrot.slane %v718, 5
      %v751 = vrot.slane %v750, 4
      %v752 = vrot.slane %v719, 5
      %v753 = vsel %vm441, %v751, %v752
      %v754 = vrot.slane %v720, 5
      %v755 = vrot.slane %v754, 4
      %v756 = vrot.slane %v721, 5
      %v757 = vsel %vm441, %v755, %v756
      %v758 = vrot.slane %v722, 5
      %v759 = vrot.slane %v758, 4
      %v760 = vrot.slane %v723, 5
      %v761 = vsel %vm441, %v759, %v760
      %v762 = vrot.slane %v724, 5
      %v763 = vrot.slane %v762, 4
      %v764 = vrot.slane %v725, 5
      %v765 = vsel %vm441, %v763, %v764
      %v766 = vrot.slane %v726, 5
      %v767 = vrot.slane %v766, 4
      %v768 = vrot.slane %v727, 5
      %v769 = vsel %vm441, %v767, %v768
      %v770 = vrot.slane %v728, 5
      %v771 = vrot.slane %v770, 4
      %v772 = vrot.slane %v729, 5
      %v773 = vsel %vm441, %v771, %v772
      %v774 = vrot.slane %v730, 5
      %v775 = vrot.slane %v774, 4
      %v776 = vrot.slane %v731, 5
      %v777 = vsel %vm441, %v775, %v776
      %v778 = vrot.slane %v732, 5
      %v779 = vrot.slane %v778, 4
      %v780 = vrot.slane %v733, 5
      %v781 = vsel %vm441, %v779, %v780
      %782 = vrot.lane.b32.xlu0 %v753, 20
      %v783 = vpop.permute.xlu0 %782
      %784 = vrot.lane.b32.xlu0 %v757, 20
      %v785 = vpop.permute.xlu0 %784
      %786 = vrot.lane.b32.xlu0 %v761, 20
      %v787 = vpop.permute.xlu0 %786
      %788 = vrot.lane.b32.xlu0 %v765, 20
      %v789 = vpop.permute.xlu0 %788
      %790 = vrot.lane.b32.xlu0 %v769, 20
      %v791 = vpop.permute.xlu0 %790
      %792 = vrot.lane.b32.xlu0 %v773, 20
      %v793 = vpop.permute.xlu0 %792
      %794 = vrot.lane.b32.xlu0 %v777, 20
      %v795 = vpop.permute.xlu0 %794
      %796 = vrot.lane.b32.xlu0 %v781, 20
      %v797 = vpop.permute.xlu0 %796
      %vm806 = vcmask 191648
      %807 = vst.msk [vmem:[#allocation2] sm:$0xf] %vm806, %v783
      %808 = vst.msk [vmem:[#allocation2 + $0x4] sm:$0xf] %vm806, %v785
      %809 = vst.msk [vmem:[#allocation2 + $0x8] sm:$0xf] %vm806, %v787
      %810 = vst.msk [vmem:[#allocation2 + $0xc] sm:$0xf] %vm806, %v789
      %811 = vst.msk [vmem:[#allocation2 + $0x10] sm:$0xf] %vm806, %v791
      %812 = vst.msk [vmem:[#allocation2 + $0x14] sm:$0xf] %vm806, %v793
      %813 = vst.msk [vmem:[#allocation2 + $0x18] sm:$0xf] %vm806, %v795
      %814 = vst.msk [vmem:[#allocation2 + $0x1c] sm:$0xf] %vm806, %v797
      %s815 = scalar_lea.vmem %s219, 16
      %v816 = vld [vmem:[%s815] sm:$0xf]
      %v817 = vld [vmem:[%s815 + $0x8] sm:$0xf]
      %v818 = vld [vmem:[%s815 + $0x10] sm:$0xf]
      %v819 = vld [vmem:[%s815 + $0x18] sm:$0xf]
      %v820 = vld [vmem:[%s815 + $0x20] sm:$0xf]
      %v821 = vld [vmem:[%s815 + $0x28] sm:$0xf]
      %v822 = vld [vmem:[%s815 + $0x30] sm:$0xf]
      %v823 = vld [vmem:[%s815 + $0x38] sm:$0xf]
      %832 = vrot.lane.b32.xlu0 %v816, 24
      %v833 = vpop.permute.xlu0 %832
      %834 = vrot.lane.b32.xlu0 %v817, 24
      %v835 = vpop.permute.xlu0 %834
      %836 = vrot.lane.b32.xlu0 %v818, 24
      %v837 = vpop.permute.xlu0 %836
      %838 = vrot.lane.b32.xlu0 %v819, 24
      %v839 = vpop.permute.xlu0 %838
      %840 = vrot.lane.b32.xlu0 %v820, 24
      %v841 = vpop.permute.xlu0 %840
      %842 = vrot.lane.b32.xlu0 %v821, 24
      %v843 = vpop.permute.xlu0 %842
      %844 = vrot.lane.b32.xlu0 %v822, 24
      %v845 = vpop.permute.xlu0 %844
      %846 = vrot.lane.b32.xlu0 %v823, 24
      %v847 = vpop.permute.xlu0 %846
      %vm856 = vcmask 224448
      %857 = vst.msk [vmem:[#allocation2] sm:$0xf] %vm856, %v833
      %858 = vst.msk [vmem:[#allocation2 + $0x4] sm:$0xf] %vm856, %v835
      %859 = vst.msk [vmem:[#allocation2 + $0x8] sm:$0xf] %vm856, %v837
      %860 = vst.msk [vmem:[#allocation2 + $0xc] sm:$0xf] %vm856, %v839
      %861 = vst.msk [vmem:[#allocation2 + $0x10] sm:$0xf] %vm856, %v841
      %862 = vst.msk [vmem:[#allocation2 + $0x14] sm:$0xf] %vm856, %v843
      %863 = vst.msk [vmem:[#allocation2 + $0x18] sm:$0xf] %vm856, %v845
      %864 = vst.msk [vmem:[#allocation2 + $0x1c] sm:$0xf] %vm856, %v847
      %v865 = vld [vmem:[%s815] sm:$0xf]
      %v866 = vld [vmem:[%s815 + $0x4] sm:$0x1]
      %v867 = vld [vmem:[%s815 + $0x8] sm:$0xf]
      %v868 = vld [vmem:[%s815 + $0xc] sm:$0x1]
      %v869 = vld [vmem:[%s815 + $0x10] sm:$0xf]
      %v870 = vld [vmem:[%s815 + $0x14] sm:$0x1]
      %v871 = vld [vmem:[%s815 + $0x18] sm:$0xf]
      %v872 = vld [vmem:[%s815 + $0x1c] sm:$0x1]
      %v873 = vld [vmem:[%s815 + $0x20] sm:$0xf]
      %v874 = vld [vmem:[%s815 + $0x24] sm:$0x1]
      %v875 = vld [vmem:[%s815 + $0x28] sm:$0xf]
      %v876 = vld [vmem:[%s815 + $0x2c] sm:$0x1]
      %v877 = vld [vmem:[%s815 + $0x30] sm:$0xf]
      %v878 = vld [vmem:[%s815 + $0x34] sm:$0x1]
      %v879 = vld [vmem:[%s815 + $0x38] sm:$0xf]
      %v880 = vld [vmem:[%s815 + $0x3c] sm:$0x1]
      %v882 = vshrl.u32 %v865, 16
      %v884 = vrot.slane %v882, 4
      %v885 = vshll.u32 %v865, 16
      %v887 = vrot.slane %v885, 5
      %v888 = vor.u32 %v884, %v887
      %v889 = vrot.slane %v888, 4
      %v891 = vshll.u32 %v866, 16
      %v893 = vrot.slane %v891, 5
      %v894 = vsel %vm261, %v889, %v893
      %v896 = vshrl.u32 %v867, 16
      %v898 = vrot.slane %v896, 4
      %v899 = vshll.u32 %v867, 16
      %v901 = vrot.slane %v899, 5
      %v902 = vor.u32 %v898, %v901
      %v903 = vrot.slane %v902, 4
      %v905 = vshll.u32 %v868, 16
      %v907 = vrot.slane %v905, 5
      %v908 = vsel %vm261, %v903, %v907
      %v910 = vshrl.u32 %v869, 16
      %v912 = vrot.slane %v910, 4
      %v913 = vshll.u32 %v869, 16
      %v915 = vrot.slane %v913, 5
      %v916 = vor.u32 %v912, %v915
      %v917 = vrot.slane %v916, 4
      %v919 = vshll.u32 %v870, 16
      %v921 = vrot.slane %v919, 5
      %v922 = vsel %vm261, %v917, %v921
      %v924 = vshrl.u32 %v871, 16
      %v926 = vrot.slane %v924, 4
      %v927 = vshll.u32 %v871, 16
      %v929 = vrot.slane %v927, 5
      %v930 = vor.u32 %v926, %v929
      %v931 = vrot.slane %v930, 4
      %v933 = vshll.u32 %v872, 16
      %v935 = vrot.slane %v933, 5
      %v936 = vsel %vm261, %v931, %v935
      %v938 = vshrl.u32 %v873, 16
      %v940 = vrot.slane %v938, 4
      %v941 = vshll.u32 %v873, 16
      %v943 = vrot.slane %v941, 5
      %v944 = vor.u32 %v940, %v943
      %v945 = vrot.slane %v944, 4
      %v947 = vshll.u32 %v874, 16
      %v949 = vrot.slane %v947, 5
      %v950 = vsel %vm261, %v945, %v949
      %v952 = vshrl.u32 %v875, 16
      %v954 = vrot.slane %v952, 4
      %v955 = vshll.u32 %v875, 16
      %v957 = vrot.slane %v955, 5
      %v958 = vor.u32 %v954, %v957
      %v959 = vrot.slane %v958, 4
      %v961 = vshll.u32 %v876, 16
      %v963 = vrot.slane %v961, 5
      %v964 = vsel %vm261, %v959, %v963
      %v966 = vshrl.u32 %v877, 16
      %v968 = vrot.slane %v966, 4
      %v969 = vshll.u32 %v877, 16
      %v971 = vrot.slane %v969, 5
      %v972 = vor.u32 %v968, %v971
      %v973 = vrot.slane %v972, 4
      %v975 = vshll.u32 %v878, 16
      %v977 = vrot.slane %v975, 5
      %v978 = vsel %vm261, %v973, %v977
      %v980 = vshrl.u32 %v879, 16
      %v982 = vrot.slane %v980, 4
      %v983 = vshll.u32 %v879, 16
      %v985 = vrot.slane %v983, 5
      %v986 = vor.u32 %v982, %v985
      %v987 = vrot.slane %v986, 4
      %v989 = vshll.u32 %v880, 16
      %v991 = vrot.slane %v989, 5
      %v992 = vsel %vm261, %v987, %v991
      %993 = vrot.lane.b32.xlu0 %v894, 28
      %v994 = vpop.permute.xlu0 %993
      %995 = vrot.lane.b32.xlu0 %v908, 28
      %v996 = vpop.permute.xlu0 %995
      %997 = vrot.lane.b32.xlu0 %v922, 28
      %v998 = vpop.permute.xlu0 %997
      %999 = vrot.lane.b32.xlu0 %v936, 28
      %v1000 = vpop.permute.xlu0 %999
      %1001 = vrot.lane.b32.xlu0 %v950, 28
      %v1002 = vpop.permute.xlu0 %1001
      %1003 = vrot.lane.b32.xlu0 %v964, 28
      %v1004 = vpop.permute.xlu0 %1003
      %1005 = vrot.lane.b32.xlu0 %v978, 28
      %v1006 = vpop.permute.xlu0 %1005
      %1007 = vrot.lane.b32.xlu0 %v992, 28
      %v1008 = vpop.permute.xlu0 %1007
      %vm1017 = vcmask 257248
      %1018 = vst.msk [vmem:[#allocation2] sm:$0xf] %vm1017, %v994
      %1019 = vst.msk [vmem:[#allocation2 + $0x4] sm:$0xf] %vm1017, %v996
      %1020 = vst.msk [vmem:[#allocation2 + $0x8] sm:$0xf] %vm1017, %v998
      %1021 = vst.msk [vmem:[#allocation2 + $0xc] sm:$0xf] %vm1017, %v1000
      %1022 = vst.msk [vmem:[#allocation2 + $0x10] sm:$0xf] %vm1017, %v1002
      %1023 = vst.msk [vmem:[#allocation2 + $0x14] sm:$0xf] %vm1017, %v1004
      %1024 = vst.msk [vmem:[#allocation2 + $0x18] sm:$0xf] %vm1017, %v1006
      %1025 = vst.msk [vmem:[#allocation2 + $0x1c] sm:$0xf] %vm1017, %v1008
      %v1026 = vld [vmem:[%s815] sm:$0xe]
      %v1027 = vld [vmem:[%s815 + $0x4] sm:$0x1]
      %v1028 = vld [vmem:[%s815 + $0x8] sm:$0xe]
      %v1029 = vld [vmem:[%s815 + $0xc] sm:$0x1]
      %v1030 = vld [vmem:[%s815 + $0x10] sm:$0xe]
      %v1031 = vld [vmem:[%s815 + $0x14] sm:$0x1]
      %v1032 = vld [vmem:[%s815 + $0x18] sm:$0xe]
      %v1033 = vld [vmem:[%s815 + $0x1c] sm:$0x1]
      %v1034 = vld [vmem:[%s815 + $0x20] sm:$0xe]
      %v1035 = vld [vmem:[%s815 + $0x24] sm:$0x1]
      %v1036 = vld [vmem:[%s815 + $0x28] sm:$0xe]
      %v1037 = vld [vmem:[%s815 + $0x2c] sm:$0x1]
      %v1038 = vld [vmem:[%s815 + $0x30] sm:$0xe]
      %v1039 = vld [vmem:[%s815 + $0x34] sm:$0x1]
      %v1040 = vld [vmem:[%s815 + $0x38] sm:$0xe]
      %v1041 = vld [vmem:[%s815 + $0x3c] sm:$0x1]
      %v1058 = vrot.slane %v1026, 5
      %v1059 = vrot.slane %v1058, 4
      %v1060 = vrot.slane %v1027, 5
      %v1061 = vsel %vm441, %v1059, %v1060
      %v1062 = vrot.slane %v1028, 5
      %v1063 = vrot.slane %v1062, 4
      %v1064 = vrot.slane %v1029, 5
      %v1065 = vsel %vm441, %v1063, %v1064
      %v1066 = vrot.slane %v1030, 5
      %v1067 = vrot.slane %v1066, 4
      %v1068 = vrot.slane %v1031, 5
      %v1069 = vsel %vm441, %v1067, %v1068
      %v1070 = vrot.slane %v1032, 5
      %v1071 = vrot.slane %v1070, 4
      %v1072 = vrot.slane %v1033, 5
      %v1073 = vsel %vm441, %v1071, %v1072
      %v1074 = vrot.slane %v1034, 5
      %v1075 = vrot.slane %v1074, 4
      %v1076 = vrot.slane %v1035, 5
      %v1077 = vsel %vm441, %v1075, %v1076
      %v1078 = vrot.slane %v1036, 5
      %v1079 = vrot.slane %v1078, 4
      %v1080 = vrot.slane %v1037, 5
      %v1081 = vsel %vm441, %v1079, %v1080
      %v1082 = vrot.slane %v1038, 5
      %v1083 = vrot.slane %v1082, 4
      %v1084 = vrot.slane %v1039, 5
      %v1085 = vsel %vm441, %v1083, %v1084
      %v1086 = vrot.slane %v1040, 5
      %v1087 = vrot.slane %v1086, 4
      %v1088 = vrot.slane %v1041, 5
      %v1089 = vsel %vm441, %v1087, %v1088
      %1090 = vrot.lane.b32.xlu0 %v1061, 32
      %v1091 = vpop.permute.xlu0 %1090
      %1092 = vrot.lane.b32.xlu0 %v1065, 32
      %v1093 = vpop.permute.xlu0 %1092
      %1094 = vrot.lane.b32.xlu0 %v1069, 32
      %v1095 = vpop.permute.xlu0 %1094
      %1096 = vrot.lane.b32.xlu0 %v1073, 32
      %v1097 = vpop.permute.xlu0 %1096
      %1098 = vrot.lane.b32.xlu0 %v1077, 32
      %v1099 = vpop.permute.xlu0 %1098
      %1100 = vrot.lane.b32.xlu0 %v1081, 32
      %v1101 = vpop.permute.xlu0 %1100
      %1102 = vrot.lane.b32.xlu0 %v1085, 32
      %v1103 = vpop.permute.xlu0 %1102
      %1104 = vrot.lane.b32.xlu0 %v1089, 32
      %v1105 = vpop.permute.xlu0 %1104
      %vm1114 = vcmask 290048
      %1115 = vst.msk [vmem:[#allocation2] sm:$0xf] %vm1114, %v1091
      %1116 = vst.msk [vmem:[#allocation2 + $0x4] sm:$0xf] %vm1114, %v1093
      %1117 = vst.msk [vmem:[#allocation2 + $0x8] sm:$0xf] %vm1114, %v1095
      %1118 = vst.msk [vmem:[#allocation2 + $0xc] sm:$0xf] %vm1114, %v1097
      %1119 = vst.msk [vmem:[#allocation2 + $0x10] sm:$0xf] %vm1114, %v1099
      %1120 = vst.msk [vmem:[#allocation2 + $0x14] sm:$0xf] %vm1114, %v1101
      %1121 = vst.msk [vmem:[#allocation2 + $0x18] sm:$0xf] %vm1114, %v1103
      %1122 = vst.msk [vmem:[#allocation2 + $0x1c] sm:$0xf] %vm1114, %v1105
      %v1123 = vld [vmem:[#allocation2] sm:$0xf]
      %v1124 = vld [vmem:[#allocation2 + $0x4] sm:$0xf]
      %v1125 = vld [vmem:[#allocation2 + $0x8] sm:$0xf]
      %v1126 = vld [vmem:[#allocation2 + $0xc] sm:$0xf]
      %v1127 = vld [vmem:[#allocation2 + $0x10] sm:$0xf]
      %v1128 = vld [vmem:[#allocation2 + $0x14] sm:$0xf]
      %v1129 = vld [vmem:[#allocation2 + $0x18] sm:$0xf]
      %v1130 = vld [vmem:[#allocation2 + $0x1c] sm:$0xf]
      %v1131 = vld [vmem:[%s1] sm:$0xf]
      %v1132 = vld [vmem:[%s1 + $0x4] sm:$0xf]
      %v1133 = vld [vmem:[%s1 + $0x8] sm:$0xf]
      %v1134 = vld [vmem:[%s1 + $0xc] sm:$0xf]
      %v1135 = vld [vmem:[%s1 + $0x10] sm:$0x3]
      %v1136 = vld [vmem:[%s2] sm:$0x1]
      %v1138 = vlaneseq
      %v1139 = vshrl.u32 %v1138, 7
      %v1140 = vsub.s32 0, %v1139
      %v1141 = vrot.slane %v1136, %v1140
      %v1151 = vunpack.c.l.b16 %v1123
      %v1152 = vunpack.c.l.b16 %v1124
      %v1153 = vunpack.c.l.b16 %v1125
      %v1154 = vunpack.c.l.b16 %v1126
      %v1155 = vunpack.c.l.b16 %v1127
      %v1156 = vunpack.c.l.b16 %v1128
      %v1157 = vunpack.c.l.b16 %v1129
      %v1158 = vunpack.c.l.b16 %v1130
      %v1159 = vpack.c.b16 %v1152, %v1151
      %v1160 = vpack.c.b16 %v1154, %v1153
      %v1161 = vpack.c.b16 %v1156, %v1155
      %v1162 = vpack.c.b16 %v1158, %v1157
      %v1168 = vunpack.c.l.b16 %v1131
      %v1169 = vunpack.c.l.b16 %v1132
      %v1170 = vunpack.c.l.b16 %v1133
      %v1171 = vunpack.c.l.b16 %v1134
      %v1172 = vunpack.c.l.b16 %v1135
      %v1173 = vpack.c.b16 %v1169, %v1168
      %v1174 = vpack.c.b16 %v1171, %v1170
      %v1175 = vpack.c.b16 %v1172, %v1172
      %vm1178 = vcmask 293888
      %v1180 = vsel %vm1178, %v1159, 0
      %v1183 = vsel %vm1178, %v1160, 0
      %v1186 = vsel %vm1178, %v1161, 0
      %v1189 = vsel %vm1178, %v1162, 0
      %vm1191 = vcmask 1041408
      %v1193 = vsel %vm1191, %v1175, 0
      %1195 = vmatprep.subr.bf16.mxu0 0
      %1196 = vmatpush1.bf16.msra.mxu0 0
      %1197 = vmatprep.subr.bf16.mxu0 0
      %1198 = vmatpush1.bf16.msra.mxu0 0
      %1199 = vmatprep.subr.bf16.mxu0 0
      %1200 = vmatpush1.bf16.msra.mxu0 0
      %1201 = vmatprep.subr.bf16.mxu0 0
      %1202 = vmatpush1.bf16.msra.mxu0 0
      %1203 = vmatprep.subr.bf16.mxu0 0
      %1204 = vmatpush1.bf16.msra.mxu0 0
      %1205 = vmatprep.subr.bf16.mxu0 0
      %1206 = vmatpush1.bf16.msra.mxu0 %v1193
      %1207 = vmatprep.subr.bf16.mxu0 0
      %1208 = vmatpush1.bf16.msra.mxu0 %v1174
      %1209 = vmatprep.subr.bf16.mxu0 0
      %1210 = vmatpush1.bf16.msra.mxu0 %v1173
      %1211 = vmatprep.subr.bf16.mxu0 0
      %1212 = vmatpush2.bf16.msra.mxu0 0
      %1213 = vmatprep.subr.bf16.mxu0 0
      %1214 = vmatpush2.bf16.msra.mxu0 0
      %1215 = vmatprep.subr.bf16.mxu0 0
      %1216 = vmatpush2.bf16.msra.mxu0 0
      %1217 = vmatprep.subr.bf16.mxu0 0
      %1218 = vmatpush2.bf16.msra.mxu0 0
      %1219 = vmatprep.subr.bf16.mxu0 0
      %1220 = vmatpush2.bf16.msra.mxu0 0
      %1221 = vmatprep.subr.bf16.mxu0 0
      %1222 = vmatpush2.bf16.msra.mxu0 0
      %1223 = vmatprep.subr.bf16.mxu0 0
      %1224 = vmatpush2.bf16.msra.mxu0 0
      %1225 = vmatprep.subr.bf16.mxu0 0
      %1226 = vmatpush2.bf16.msra.mxu0 0
      %1227 = vmatprep.mubr.bf16.mxu0 0
      %1228 = vmatmul.mubr.bf16.gmra.mxu0 %v1180
      %v1229 = vpop.f32.mrf.mxu0
      %v1230 = vadd.f32 %v1141, %v1229
      %v1231 = vpop.f32.mrf.mxu0
      %v1232 = vpop.f32.mrf.mxu0
      %v1233 = vadd.f32 %v1141, %v1232
      %v1234 = vpop.f32.mrf.mxu0
      %1235 = vmatprep.mubr.bf16.mxu0 0
      %1236 = vmatmul.mubr.bf16.gmra.mxu0 %v1183
      %v1237 = vpop.f32.mrf.mxu0
      %v1238 = vadd.f32 %v1141, %v1237
      %v1239 = vpop.f32.mrf.mxu0
      %v1240 = vpop.f32.mrf.mxu0
      %v1241 = vadd.f32 %v1141, %v1240
      %v1242 = vpop.f32.mrf.mxu0
      %1243 = vmatprep.mubr.bf16.mxu0 0
      %1244 = vmatmul.mubr.bf16.gmra.mxu0 %v1186
      %v1245 = vpop.f32.mrf.mxu0
      %v1246 = vadd.f32 %v1141, %v1245
      %v1247 = vpop.f32.mrf.mxu0
      %v1248 = vpop.f32.mrf.mxu0
      %v1249 = vadd.f32 %v1141, %v1248
      %v1250 = vpop.f32.mrf.mxu0
      %1251 = vmatprep.mubr.bf16.mxu0 0
      %1252 = vmatmul.mubr.bf16.gmra.mxu0 %v1189
      %v1253 = vpop.f32.mrf.mxu0
      %v1254 = vadd.f32 %v1141, %v1253
      %v1255 = vpop.f32.mrf.mxu0
      %v1256 = vpop.f32.mrf.mxu0
      %v1257 = vadd.f32 %v1141, %v1256
      %v1258 = vpop.f32.mrf.mxu0
      %1259 = vdwg.mxu0
      %vm1260 = vcmp.gt.f32.partialorder %v1230, 0.0
      %vm1261 = vcmp.gt.f32.partialorder %v1233, 0.0
      %vm1262 = vcmp.gt.f32.partialorder %v1238, 0.0
      %vm1263 = vcmp.gt.f32.partialorder %v1241, 0.0
      %vm1264 = vcmp.gt.f32.partialorder %v1246, 0.0
      %vm1265 = vcmp.gt.f32.partialorder %v1249, 0.0
      %vm1266 = vcmp.gt.f32.partialorder %v1254, 0.0
      %vm1267 = vcmp.gt.f32.partialorder %v1257, 0.0
      %v1268 = vmul.f32 %v1230, 0.01
      %v1269 = vmul.f32 %v1233, 0.01
      %v1270 = vmul.f32 %v1238, 0.01
      %v1271 = vmul.f32 %v1241, 0.01
      %v1272 = vmul.f32 %v1246, 0.01
      %v1273 = vmul.f32 %v1249, 0.01
      %v1274 = vmul.f32 %v1254, 0.01
      %v1275 = vmul.f32 %v1257, 0.01
      %v1276 = vsel %vm1260, %v1230, %v1268
      %v1277 = vsel %vm1261, %v1233, %v1269
      %v1278 = vsel %vm1262, %v1238, %v1270
      %v1279 = vsel %vm1263, %v1241, %v1271
      %v1280 = vsel %vm1264, %v1246, %v1272
      %v1281 = vsel %vm1265, %v1249, %v1273
      %v1282 = vsel %vm1266, %v1254, %v1274
      %v1283 = vsel %vm1267, %v1257, %v1275
      %vm1284 = vcmask 60416
      %1285 = vst.msk [vmem:[#allocation3] sm:$0xf] %vm1284, 0
      %vm1286 = vcmask 57344
      %1287 = vst.msk [vmem:[#allocation3 + $0x4] sm:$0x1] %vm1286, 0
      %s1288 = scalar_lea.vmem [#allocation3], 72
      %1289 = vst.msk [vmem:[%s1288] sm:$0xf] %vm1284, 0
      %1290 = vst.msk [vmem:[%s1288 + $0x4] sm:$0x1] %vm1286, 0
      %vm1291 = vcmask 57344
      %vm1292 = vsmask.f32 256
      %vm1293 = vmand %vm1291, %vm1292
      %v1294 = vld [vmem:[#allocation3] sm:$0x1]
      %v1295 = vsel %vm1293, 0, %v1294
      %1296 = vst [vmem:[#allocation3] sm:$0x1] %v1295
      %v1297 = vld [vmem:[#allocation3 + $0x8] sm:$0x1]
      %v1298 = vsel %vm1293, 0, %v1297
      %1299 = vst [vmem:[#allocation3 + $0x8] sm:$0x1] %v1298
      %v1300 = vld [vmem:[#allocation3 + $0x10] sm:$0x1]
      %v1301 = vsel %vm1293, 0, %v1300
      %1302 = vst [vmem:[#allocation3 + $0x10] sm:$0x1] %v1301
      %v1303 = vld [vmem:[#allocation3 + $0x18] sm:$0x1]
      %v1304 = vsel %vm1293, 0, %v1303
      %1305 = vst [vmem:[#allocation3 + $0x18] sm:$0x1] %v1304
      %v1306 = vld [vmem:[#allocation3 + $0x20] sm:$0x1]
      %v1307 = vsel %vm1293, 0, %v1306
      %1308 = vst [vmem:[#allocation3 + $0x20] sm:$0x1] %v1307
      %v1309 = vld [vmem:[#allocation3 + $0x28] sm:$0x1]
      %v1310 = vsel %vm1293, 0, %v1309
      %1311 = vst [vmem:[#allocation3 + $0x28] sm:$0x1] %v1310
      %v1312 = vld [vmem:[#allocation3 + $0x30] sm:$0x1]
      %v1313 = vsel %vm1293, 0, %v1312
      %1314 = vst [vmem:[#allocation3 + $0x30] sm:$0x1] %v1313
      %v1315 = vld [vmem:[#allocation3 + $0x38] sm:$0x1]
      %v1316 = vsel %vm1293, 0, %v1315
      %1317 = vst [vmem:[#allocation3 + $0x38] sm:$0x1] %v1316
      %v1318 = vld [vmem:[#allocation3 + $0x40] sm:$0x1]
      %v1319 = vsel %vm1293, 0, %v1318
      %1320 = vst [vmem:[#allocation3 + $0x40] sm:$0x1] %v1319
      %v1321 = vld [vmem:[#allocation3 + $0x48] sm:$0x1]
      %v1322 = vsel %vm1293, 0, %v1321
      %1323 = vst [vmem:[#allocation3 + $0x48] sm:$0x1] %v1322
      %vm1324 = vsmask.f32 7938
      %vm1325 = vmand %vm1291, %vm1324
      %v1326 = vld [vmem:[#allocation3 + $0x4] sm:$0x1]
      %v1327 = vsel %vm1325, 0, %v1326
      %1328 = vst [vmem:[#allocation3 + $0x4] sm:$0x1] %v1327
      %v1329 = vld [vmem:[#allocation3 + $0xc] sm:$0x1]
      %v1330 = vsel %vm1325, 0, %v1329
      %1331 = vst [vmem:[#allocation3 + $0xc] sm:$0x1] %v1330
      %v1332 = vld [vmem:[#allocation3 + $0x14] sm:$0x1]
      %v1333 = vsel %vm1325, 0, %v1332
      %1334 = vst [vmem:[#allocation3 + $0x14] sm:$0x1] %v1333
      %v1335 = vld [vmem:[#allocation3 + $0x1c] sm:$0x1]
      %v1336 = vsel %vm1325, 0, %v1335
      %1337 = vst [vmem:[#allocation3 + $0x1c] sm:$0x1] %v1336
      %v1338 = vld [vmem:[#allocation3 + $0x24] sm:$0x1]
      %v1339 = vsel %vm1325, 0, %v1338
      %1340 = vst [vmem:[#allocation3 + $0x24] sm:$0x1] %v1339
      %v1341 = vld [vmem:[#allocation3 + $0x2c] sm:$0x1]
      %v1342 = vsel %vm1325, 0, %v1341
      %1343 = vst [vmem:[#allocation3 + $0x2c] sm:$0x1] %v1342
      %v1344 = vld [vmem:[#allocation3 + $0x34] sm:$0x1]
      %v1345 = vsel %vm1325, 0, %v1344
      %1346 = vst [vmem:[#allocation3 + $0x34] sm:$0x1] %v1345
      %v1347 = vld [vmem:[#allocation3 + $0x3c] sm:$0x1]
      %v1348 = vsel %vm1325, 0, %v1347
      %1349 = vst [vmem:[#allocation3 + $0x3c] sm:$0x1] %v1348
      %v1350 = vld [vmem:[#allocation3 + $0x44] sm:$0x1]
      %v1351 = vsel %vm1325, 0, %v1350
      %1352 = vst [vmem:[#allocation3 + $0x44] sm:$0x1] %v1351
      %v1353 = vld [vmem:[#allocation3 + $0x4c] sm:$0x1]
      %v1354 = vsel %vm1325, 0, %v1353
      %1355 = vst [vmem:[#allocation3 + $0x4c] sm:$0x1] %v1354
      %v1356 = vpack.c.bf16 %v1276, %v1276
      %v1357 = vpack.c.bf16 %v1277, %v1277
      %v1358 = vpack.c.bf16 %v1278, %v1278
      %v1359 = vpack.c.bf16 %v1279, %v1279
      %v1360 = vpack.c.bf16 %v1280, %v1280
      %v1361 = vpack.c.bf16 %v1281, %v1281
      %v1362 = vpack.c.bf16 %v1282, %v1282
      %v1363 = vpack.c.bf16 %v1283, %v1283
      %v1372 = vunpack.c.l.b16 %v1356
      %v1373 = vunpack.c.l.b16 %v1357
      %v1374 = vunpack.c.l.b16 %v1358
      %v1375 = vunpack.c.l.b16 %v1359
      %v1376 = vunpack.c.l.b16 %v1360
      %v1377 = vunpack.c.l.b16 %v1361
      %v1378 = vunpack.c.l.b16 %v1362
      %v1379 = vunpack.c.l.b16 %v1363
      %v1380 = vpack.c.b16 %v1372, %v1372
      %v1381 = vpack.c.b16 %v1373, %v1373
      %v1382 = vpack.c.b16 %v1374, %v1374
      %v1383 = vpack.c.b16 %v1375, %v1375
      %v1384 = vpack.c.b16 %v1376, %v1376
      %v1385 = vpack.c.b16 %v1377, %v1377
      %v1386 = vpack.c.b16 %v1378, %v1378
      %v1387 = vpack.c.b16 %v1379, %v1379
      %v1389 = vshrl.u32 %v1380, 16
      %v1391 = vrot.slane %v1389, 7
      %v1392 = vshll.u32 %v1380, 16
      %v1394 = vor.u32 %v1391, %v1392
      %v1395 = vrot.slane %v1391, 4
      %v1397 = vshrl.u32 %v1381, 16
      %v1399 = vrot.slane %v1397, 7
      %v1400 = vshll.u32 %v1381, 16
      %v1402 = vor.u32 %v1399, %v1400
      %v1403 = vrot.slane %v1399, 4
      %v1405 = vshrl.u32 %v1382, 16
      %v1407 = vrot.slane %v1405, 7
      %v1408 = vshll.u32 %v1382, 16
      %v1410 = vor.u32 %v1407, %v1408
      %v1411 = vrot.slane %v1407, 4
      %v1413 = vshrl.u32 %v1383, 16
      %v1415 = vrot.slane %v1413, 7
      %v1416 = vshll.u32 %v1383, 16
      %v1418 = vor.u32 %v1415, %v1416
      %v1419 = vrot.slane %v1415, 4
      %v1421 = vshrl.u32 %v1384, 16
      %v1423 = vrot.slane %v1421, 7
      %v1424 = vshll.u32 %v1384, 16
      %v1426 = vor.u32 %v1423, %v1424
      %v1427 = vrot.slane %v1423, 4
      %v1429 = vshrl.u32 %v1385, 16
      %v1431 = vrot.slane %v1429, 7
      %v1432 = vshll.u32 %v1385, 16
      %v1434 = vor.u32 %v1431, %v1432
      %v1435 = vrot.slane %v1431, 4
      %v1437 = vshrl.u32 %v1386, 16
      %v1439 = vrot.slane %v1437, 7
      %v1440 = vshll.u32 %v1386, 16
      %v1442 = vor.u32 %v1439, %v1440
      %v1443 = vrot.slane %v1439, 4
      %v1445 = vshrl.u32 %v1387, 16
      %v1447 = vrot.slane %v1445, 7
      %v1448 = vshll.u32 %v1387, 16
      %v1450 = vor.u32 %v1447, %v1448
      %v1451 = vrot.slane %v1447, 4
      %s1468 = scalar_lea.vmem [#allocation3], 8
      %vm1469 = vcmask 60416
      %vm1470 = vmand %vm1469, %vm1324
      %v1471 = vld [vmem:[%s1468] sm:$0xf]
      %v1472 = vsel %vm1470, %v1394, %v1471
      %1473 = vst [vmem:[%s1468] sm:$0xf] %v1472
      %v1474 = vld [vmem:[%s1468 + $0x4] sm:$0x1]
      %v1475 = vsel %vm1293, %v1395, %v1474
      %1476 = vst [vmem:[%s1468 + $0x4] sm:$0x1] %v1475
      %v1477 = vld [vmem:[%s1468 + $0x8] sm:$0xf]
      %v1478 = vsel %vm1470, %v1402, %v1477
      %1479 = vst [vmem:[%s1468 + $0x8] sm:$0xf] %v1478
      %v1480 = vld [vmem:[%s1468 + $0xc] sm:$0x1]
      %v1481 = vsel %vm1293, %v1403, %v1480
      %1482 = vst [vmem:[%s1468 + $0xc] sm:$0x1] %v1481
      %v1483 = vld [vmem:[%s1468 + $0x10] sm:$0xf]
      %v1484 = vsel %vm1470, %v1410, %v1483
      %1485 = vst [vmem:[%s1468 + $0x10] sm:$0xf] %v1484
      %v1486 = vld [vmem:[%s1468 + $0x14] sm:$0x1]
      %v1487 = vsel %vm1293, %v1411, %v1486
      %1488 = vst [vmem:[%s1468 + $0x14] sm:$0x1] %v1487
      %v1489 = vld [vmem:[%s1468 + $0x18] sm:$0xf]
      %v1490 = vsel %vm1470, %v1418, %v1489
      %1491 = vst [vmem:[%s1468 + $0x18] sm:$0xf] %v1490
      %v1492 = vld [vmem:[%s1468 + $0x1c] sm:$0x1]
      %v1493 = vsel %vm1293, %v1419, %v1492
      %1494 = vst [vmem:[%s1468 + $0x1c] sm:$0x1] %v1493
      %v1495 = vld [vmem:[%s1468 + $0x20] sm:$0xf]
      %v1496 = vsel %vm1470, %v1426, %v1495
      %1497 = vst [vmem:[%s1468 + $0x20] sm:$0xf] %v1496
      %v1498 = vld [vmem:[%s1468 + $0x24] sm:$0x1]
      %v1499 = vsel %vm1293, %v1427, %v1498
      %1500 = vst [vmem:[%s1468 + $0x24] sm:$0x1] %v1499
      %v1501 = vld [vmem:[%s1468 + $0x28] sm:$0xf]
      %v1502 = vsel %vm1470, %v1434, %v1501
      %1503 = vst [vmem:[%s1468 + $0x28] sm:$0xf] %v1502
      %v1504 = vld [vmem:[%s1468 + $0x2c] sm:$0x1]
      %v1505 = vsel %vm1293, %v1435, %v1504
      %1506 = vst [vmem:[%s1468 + $0x2c] sm:$0x1] %v1505
      %v1507 = vld [vmem:[%s1468 + $0x30] sm:$0xf]
      %v1508 = vsel %vm1470, %v1442, %v1507
      %1509 = vst [vmem:[%s1468 + $0x30] sm:$0xf] %v1508
      %v1510 = vld [vmem:[%s1468 + $0x34] sm:$0x1]
      %v1511 = vsel %vm1293, %v1443, %v1510
      %1512 = vst [vmem:[%s1468 + $0x34] sm:$0x1] %v1511
      %v1513 = vld [vmem:[%s1468 + $0x38] sm:$0xf]
      %v1514 = vsel %vm1470, %v1450, %v1513
      %1515 = vst [vmem:[%s1468 + $0x38] sm:$0xf] %v1514
      %v1516 = vld [vmem:[%s1468 + $0x3c] sm:$0x1]
      %v1517 = vsel %vm1293, %v1451, %v1516
      %1518 = vst [vmem:[%s1468 + $0x3c] sm:$0x1] %v1517
      %v1519 = vld [vmem:[#allocation3] sm:$0xf]
      %v1520 = vld [vmem:[#allocation3 + $0x8] sm:$0xf]
      %v1521 = vld [vmem:[#allocation3 + $0x10] sm:$0xf]
      %v1522 = vld [vmem:[#allocation3 + $0x18] sm:$0xf]
      %v1523 = vld [vmem:[#allocation3 + $0x20] sm:$0xf]
      %v1524 = vld [vmem:[#allocation3 + $0x28] sm:$0xf]
      %v1525 = vld [vmem:[#allocation3 + $0x30] sm:$0xf]
      %v1526 = vld [vmem:[#allocation3 + $0x38] sm:$0xf]
      %1527 = vst.msk [vmem:[#allocation4] sm:$0xf] %vm1284, %v1519
      %1528 = vst.msk [vmem:[#allocation4 + $0x4] sm:$0xf] %vm1284, %v1520
      %1529 = vst.msk [vmem:[#allocation4 + $0x8] sm:$0xf] %vm1284, %v1521
      %1530 = vst.msk [vmem:[#allocation4 + $0xc] sm:$0xf] %vm1284, %v1522
      %1531 = vst.msk [vmem:[#allocation4 + $0x10] sm:$0xf] %vm1284, %v1523
      %1532 = vst.msk [vmem:[#allocation4 + $0x14] sm:$0xf] %vm1284, %v1524
      %1533 = vst.msk [vmem:[#allocation4 + $0x18] sm:$0xf] %vm1284, %v1525
      %1534 = vst.msk [vmem:[#allocation4 + $0x1c] sm:$0xf] %vm1284, %v1526
      %v1535 = vld [vmem:[#allocation3] sm:$0xf]
      %v1536 = vld [vmem:[#allocation3 + $0x4] sm:$0x1]
      %v1537 = vld [vmem:[#allocation3 + $0x8] sm:$0xf]
      %v1538 = vld [vmem:[#allocation3 + $0xc] sm:$0x1]
      %v1539 = vld [vmem:[#allocation3 + $0x10] sm:$0xf]
      %v1540 = vld [vmem:[#allocation3 + $0x14] sm:$0x1]
      %v1541 = vld [vmem:[#allocation3 + $0x18] sm:$0xf]
      %v1542 = vld [vmem:[#allocation3 + $0x1c] sm:$0x1]
      %v1543 = vld [vmem:[#allocation3 + $0x20] sm:$0xf]
      %v1544 = vld [vmem:[#allocation3 + $0x24] sm:$0x1]
      %v1545 = vld [vmem:[#allocation3 + $0x28] sm:$0xf]
      %v1546 = vld [vmem:[#allocation3 + $0x2c] sm:$0x1]
      %v1547 = vld [vmem:[#allocation3 + $0x30] sm:$0xf]
      %v1548 = vld [vmem:[#allocation3 + $0x34] sm:$0x1]
      %v1549 = vld [vmem:[#allocation3 + $0x38] sm:$0xf]
      %v1550 = vld [vmem:[#allocation3 + $0x3c] sm:$0x1]
      %v1552 = vshrl.u32 %v1535, 16
      %v1554 = vrot.slane %v1552, 4
      %v1555 = vshll.u32 %v1535, 16
      %v1557 = vrot.slane %v1555, 5
      %v1558 = vor.u32 %v1554, %v1557
      %v1559 = vrot.slane %v1558, 4
      %v1561 = vshll.u32 %v1536, 16
      %v1563 = vrot.slane %v1561, 5
      %v1564 = vsel %vm261, %v1559, %v1563
      %v1566 = vshrl.u32 %v1537, 16
      %v1568 = vrot.slane %v1566, 4
      %v1569 = vshll.u32 %v1537, 16
      %v1571 = vrot.slane %v1569, 5
      %v1572 = vor.u32 %v1568, %v1571
      %v1573 = vrot.slane %v1572, 4
      %v1575 = vshll.u32 %v1538, 16
      %v1577 = vrot.slane %v1575, 5
      %v1578 = vsel %vm261, %v1573, %v1577
      %v1580 = vshrl.u32 %v1539, 16
      %v1582 = vrot.slane %v1580, 4
      %v1583 = vshll.u32 %v1539, 16
      %v1585 = vrot.slane %v1583, 5
      %v1586 = vor.u32 %v1582, %v1585
      %v1587 = vrot.slane %v1586, 4
      %v1589 = vshll.u32 %v1540, 16
      %v1591 = vrot.slane %v1589, 5
      %v1592 = vsel %vm261, %v1587, %v1591
      %v1594 = vshrl.u32 %v1541, 16
      %v1596 = vrot.slane %v1594, 4
      %v1597 = vshll.u32 %v1541, 16
      %v1599 = vrot.slane %v1597, 5
      %v1600 = vor.u32 %v1596, %v1599
      %v1601 = vrot.slane %v1600, 4
      %v1603 = vshll.u32 %v1542, 16
      %v1605 = vrot.slane %v1603, 5
      %v1606 = vsel %vm261, %v1601, %v1605
      %v1608 = vshrl.u32 %v1543, 16
      %v1610 = vrot.slane %v1608, 4
      %v1611 = vshll.u32 %v1543, 16
      %v1613 = vrot.slane %v1611, 5
      %v1614 = vor.u32 %v1610, %v1613
      %v1615 = vrot.slane %v1614, 4
      %v1617 = vshll.u32 %v1544, 16
      %v1619 = vrot.slane %v1617, 5
      %v1620 = vsel %vm261, %v1615, %v1619
      %v1622 = vshrl.u32 %v1545, 16
      %v1624 = vrot.slane %v1622, 4
      %v1625 = vshll.u32 %v1545, 16
      %v1627 = vrot.slane %v1625, 5
      %v1628 = vor.u32 %v1624, %v1627
      %v1629 = vrot.slane %v1628, 4
      %v1631 = vshll.u32 %v1546, 16
      %v1633 = vrot.slane %v1631, 5
      %v1634 = vsel %vm261, %v1629, %v1633
      %v1636 = vshrl.u32 %v1547, 16
      %v1638 = vrot.slane %v1636, 4
      %v1639 = vshll.u32 %v1547, 16
      %v1641 = vrot.slane %v1639, 5
      %v1642 = vor.u32 %v1638, %v1641
      %v1643 = vrot.slane %v1642, 4
      %v1645 = vshll.u32 %v1548, 16
      %v1647 = vrot.slane %v1645, 5
      %v1648 = vsel %vm261, %v1643, %v1647
      %v1650 = vshrl.u32 %v1549, 16
      %v1652 = vrot.slane %v1650, 4
      %v1653 = vshll.u32 %v1549, 16
      %v1655 = vrot.slane %v1653, 5
      %v1656 = vor.u32 %v1652, %v1655
      %v1657 = vrot.slane %v1656, 4
      %v1659 = vshll.u32 %v1550, 16
      %v1661 = vrot.slane %v1659, 5
      %v1662 = vsel %vm261, %v1657, %v1661
      %1663 = vrot.lane.b32.xlu0 %v1564, 8
      %v1664 = vpop.permute.xlu0 %1663
      %1665 = vrot.lane.b32.xlu0 %v1578, 8
      %v1666 = vpop.permute.xlu0 %1665
      %1667 = vrot.lane.b32.xlu0 %v1592, 8
      %v1668 = vpop.permute.xlu0 %1667
      %1669 = vrot.lane.b32.xlu0 %v1606, 8
      %v1670 = vpop.permute.xlu0 %1669
      %1671 = vrot.lane.b32.xlu0 %v1620, 8
      %v1672 = vpop.permute.xlu0 %1671
      %1673 = vrot.lane.b32.xlu0 %v1634, 8
      %v1674 = vpop.permute.xlu0 %1673
      %1675 = vrot.lane.b32.xlu0 %v1648, 8
      %v1676 = vpop.permute.xlu0 %1675
      %1677 = vrot.lane.b32.xlu0 %v1662, 8
      %v1678 = vpop.permute.xlu0 %1677
      %vm1687 = vcmask 126016
      %1688 = vst.msk [vmem:[#allocation4] sm:$0xf] %vm1687, %v1664
      %1689 = vst.msk [vmem:[#allocation4 + $0x4] sm:$0xf] %vm1687, %v1666
      %1690 = vst.msk [vmem:[#allocation4 + $0x8] sm:$0xf] %vm1687, %v1668
      %1691 = vst.msk [vmem:[#allocation4 + $0xc] sm:$0xf] %vm1687, %v1670
      %1692 = vst.msk [vmem:[#allocation4 + $0x10] sm:$0xf] %vm1687, %v1672
      %1693 = vst.msk [vmem:[#allocation4 + $0x14] sm:$0xf] %vm1687, %v1674
      %1694 = vst.msk [vmem:[#allocation4 + $0x18] sm:$0xf] %vm1687, %v1676
      %1695 = vst.msk [vmem:[#allocation4 + $0x1c] sm:$0xf] %vm1687, %v1678
      %v1696 = vld [vmem:[#allocation3] sm:$0xe]
      %v1697 = vld [vmem:[#allocation3 + $0x4] sm:$0x1]
      %v1698 = vld [vmem:[#allocation3 + $0x8] sm:$0xe]
      %v1699 = vld [vmem:[#allocation3 + $0xc] sm:$0x1]
      %v1700 = vld [vmem:[#allocation3 + $0x10] sm:$0xe]
      %v1701 = vld [vmem:[#allocation3 + $0x14] sm:$0x1]
      %v1702 = vld [vmem:[#allocation3 + $0x18] sm:$0xe]
      %v1703 = vld [vmem:[#allocation3 + $0x1c] sm:$0x1]
      %v1704 = vld [vmem:[#allocation3 + $0x20] sm:$0xe]
      %v1705 = vld [vmem:[#allocation3 + $0x24] sm:$0x1]
      %v1706 = vld [vmem:[#allocation3 + $0x28] sm:$0xe]
      %v1707 = vld [vmem:[#allocation3 + $0x2c] sm:$0x1]
      %v1708 = vld [vmem:[#allocation3 + $0x30] sm:$0xe]
      %v1709 = vld [vmem:[#allocation3 + $0x34] sm:$0x1]
      %v1710 = vld [vmem:[#allocation3 + $0x38] sm:$0xe]
      %v1711 = vld [vmem:[#allocation3 + $0x3c] sm:$0x1]
      %v1728 = vrot.slane %v1696, 5
      %v1729 = vrot.slane %v1728, 4
      %v1730 = vrot.slane %v1697, 5
      %v1731 = vsel %vm441, %v1729, %v1730
      %v1732 = vrot.slane %v1698, 5
      %v1733 = vrot.slane %v1732, 4
      %v1734 = vrot.slane %v1699, 5
      %v1735 = vsel %vm441, %v1733, %v1734
      %v1736 = vrot.slane %v1700, 5
      %v1737 = vrot.slane %v1736, 4
      %v1738 = vrot.slane %v1701, 5
      %v1739 = vsel %vm441, %v1737, %v1738
      %v1740 = vrot.slane %v1702, 5
      %v1741 = vrot.slane %v1740, 4
      %v1742 = vrot.slane %v1703, 5
      %v1743 = vsel %vm441, %v1741, %v1742
      %v1744 = vrot.slane %v1704, 5
      %v1745 = vrot.slane %v1744, 4
      %v1746 = vrot.slane %v1705, 5
      %v1747 = vsel %vm441, %v1745, %v1746
      %v1748 = vrot.slane %v1706, 5
      %v1749 = vrot.slane %v1748, 4
      %v1750 = vrot.slane %v1707, 5
      %v1751 = vsel %vm441, %v1749, %v1750
      %v1752 = vrot.slane %v1708, 5
      %v1753 = vrot.slane %v1752, 4
      %v1754 = vrot.slane %v1709, 5
      %v1755 = vsel %vm441, %v1753, %v1754
      %v1756 = vrot.slane %v1710, 5
      %v1757 = vrot.slane %v1756, 4
      %v1758 = vrot.slane %v1711, 5
      %v1759 = vsel %vm441, %v1757, %v1758
      %1760 = vrot.lane.b32.xlu0 %v1731, 16
      %v1761 = vpop.permute.xlu0 %1760
      %1762 = vrot.lane.b32.xlu0 %v1735, 16
      %v1763 = vpop.permute.xlu0 %1762
      %1764 = vrot.lane.b32.xlu0 %v1739, 16
      %v1765 = vpop.permute.xlu0 %1764
      %1766 = vrot.lane.b32.xlu0 %v1743, 16
      %v1767 = vpop.permute.xlu0 %1766
      %1768 = vrot.lane.b32.xlu0 %v1747, 16
      %v1769 = vpop.permute.xlu0 %1768
      %1770 = vrot.lane.b32.xlu0 %v1751, 16
      %v1771 = vpop.permute.xlu0 %1770
      %1772 = vrot.lane.b32.xlu0 %v1755, 16
      %v1773 = vpop.permute.xlu0 %1772
      %1774 = vrot.lane.b32.xlu0 %v1759, 16
      %v1775 = vpop.permute.xlu0 %1774
      %vm1784 = vcmask 191616
      %1785 = vst.msk [vmem:[#allocation4] sm:$0xf] %vm1784, %v1761
      %1786 = vst.msk [vmem:[#allocation4 + $0x4] sm:$0xf] %vm1784, %v1763
      %1787 = vst.msk [vmem:[#allocation4 + $0x8] sm:$0xf] %vm1784, %v1765
      %1788 = vst.msk [vmem:[#allocation4 + $0xc] sm:$0xf] %vm1784, %v1767
      %1789 = vst.msk [vmem:[#allocation4 + $0x10] sm:$0xf] %vm1784, %v1769
      %1790 = vst.msk [vmem:[#allocation4 + $0x14] sm:$0xf] %vm1784, %v1771
      %1791 = vst.msk [vmem:[#allocation4 + $0x18] sm:$0xf] %vm1784, %v1773
      %1792 = vst.msk [vmem:[#allocation4 + $0x1c] sm:$0xf] %vm1784, %v1775
      %v1793 = vld [vmem:[%s1468] sm:$0xf]
      %v1794 = vld [vmem:[%s1468 + $0x8] sm:$0xf]
      %v1795 = vld [vmem:[%s1468 + $0x10] sm:$0xf]
      %v1796 = vld [vmem:[%s1468 + $0x18] sm:$0xf]
      %v1797 = vld [vmem:[%s1468 + $0x20] sm:$0xf]
      %v1798 = vld [vmem:[%s1468 + $0x28] sm:$0xf]
      %v1799 = vld [vmem:[%s1468 + $0x30] sm:$0xf]
      %v1800 = vld [vmem:[%s1468 + $0x38] sm:$0xf]
      %1809 = vrot.lane.b32.xlu0 %v1793, 24
      %v1810 = vpop.permute.xlu0 %1809
      %1811 = vrot.lane.b32.xlu0 %v1794, 24
      %v1812 = vpop.permute.xlu0 %1811
      %1813 = vrot.lane.b32.xlu0 %v1795, 24
      %v1814 = vpop.permute.xlu0 %1813
      %1815 = vrot.lane.b32.xlu0 %v1796, 24
      %v1816 = vpop.permute.xlu0 %1815
      %1817 = vrot.lane.b32.xlu0 %v1797, 24
      %v1818 = vpop.permute.xlu0 %1817
      %1819 = vrot.lane.b32.xlu0 %v1798, 24
      %v1820 = vpop.permute.xlu0 %1819
      %1821 = vrot.lane.b32.xlu0 %v1799, 24
      %v1822 = vpop.permute.xlu0 %1821
      %1823 = vrot.lane.b32.xlu0 %v1800, 24
      %v1824 = vpop.permute.xlu0 %1823
      %vm1833 = vcmask 257216
      %1834 = vst.msk [vmem:[#allocation4] sm:$0xf] %vm1833, %v1810
      %1835 = vst.msk [vmem:[#allocation4 + $0x4] sm:$0xf] %vm1833, %v1812
      %1836 = vst.msk [vmem:[#allocation4 + $0x8] sm:$0xf] %vm1833, %v1814
      %1837 = vst.msk [vmem:[#allocation4 + $0xc] sm:$0xf] %vm1833, %v1816
      %1838 = vst.msk [vmem:[#allocation4 + $0x10] sm:$0xf] %vm1833, %v1818
      %1839 = vst.msk [vmem:[#allocation4 + $0x14] sm:$0xf] %vm1833, %v1820
      %1840 = vst.msk [vmem:[#allocation4 + $0x18] sm:$0xf] %vm1833, %v1822
      %1841 = vst.msk [vmem:[#allocation4 + $0x1c] sm:$0xf] %vm1833, %v1824
      %v1842 = vld [vmem:[%s1468] sm:$0xf]
      %v1843 = vld [vmem:[%s1468 + $0x4] sm:$0x1]
      %v1844 = vld [vmem:[%s1468 + $0x8] sm:$0xf]
      %v1845 = vld [vmem:[%s1468 + $0xc] sm:$0x1]
      %v1846 = vld [vmem:[%s1468 + $0x10] sm:$0xf]
      %v1847 = vld [vmem:[%s1468 + $0x14] sm:$0x1]
      %v1848 = vld [vmem:[%s1468 + $0x18] sm:$0xf]
      %v1849 = vld [vmem:[%s1468 + $0x1c] sm:$0x1]
      %v1850 = vld [vmem:[%s1468 + $0x20] sm:$0xf]
      %v1851 = vld [vmem:[%s1468 + $0x24] sm:$0x1]
      %v1852 = vld [vmem:[%s1468 + $0x28] sm:$0xf]
      %v1853 = vld [vmem:[%s1468 + $0x2c] sm:$0x1]
      %v1854 = vld [vmem:[%s1468 + $0x30] sm:$0xf]
      %v1855 = vld [vmem:[%s1468 + $0x34] sm:$0x1]
      %v1856 = vld [vmem:[%s1468 + $0x38] sm:$0xf]
      %v1857 = vld [vmem:[%s1468 + $0x3c] sm:$0x1]
      %v1859 = vshrl.u32 %v1842, 16
      %v1861 = vrot.slane %v1859, 4
      %v1862 = vshll.u32 %v1842, 16
      %v1864 = vrot.slane %v1862, 5
      %v1865 = vor.u32 %v1861, %v1864
      %v1866 = vrot.slane %v1865, 4
      %v1868 = vshll.u32 %v1843, 16
      %v1870 = vrot.slane %v1868, 5
      %v1871 = vsel %vm261, %v1866, %v1870
      %v1873 = vshrl.u32 %v1844, 16
      %v1875 = vrot.slane %v1873, 4
      %v1876 = vshll.u32 %v1844, 16
      %v1878 = vrot.slane %v1876, 5
      %v1879 = vor.u32 %v1875, %v1878
      %v1880 = vrot.slane %v1879, 4
      %v1882 = vshll.u32 %v1845, 16
      %v1884 = vrot.slane %v1882, 5
      %v1885 = vsel %vm261, %v1880, %v1884
      %v1887 = vshrl.u32 %v1846, 16
      %v1889 = vrot.slane %v1887, 4
      %v1890 = vshll.u32 %v1846, 16
      %v1892 = vrot.slane %v1890, 5
      %v1893 = vor.u32 %v1889, %v1892
      %v1894 = vrot.slane %v1893, 4
      %v1896 = vshll.u32 %v1847, 16
      %v1898 = vrot.slane %v1896, 5
      %v1899 = vsel %vm261, %v1894, %v1898
      %v1901 = vshrl.u32 %v1848, 16
      %v1903 = vrot.slane %v1901, 4
      %v1904 = vshll.u32 %v1848, 16
      %v1906 = vrot.slane %v1904, 5
      %v1907 = vor.u32 %v1903, %v1906
      %v1908 = vrot.slane %v1907, 4
      %v1910 = vshll.u32 %v1849, 16
      %v1912 = vrot.slane %v1910, 5
      %v1913 = vsel %vm261, %v1908, %v1912
      %v1915 = vshrl.u32 %v1850, 16
      %v1917 = vrot.slane %v1915, 4
      %v1918 = vshll.u32 %v1850, 16
      %v1920 = vrot.slane %v1918, 5
      %v1921 = vor.u32 %v1917, %v1920
      %v1922 = vrot.slane %v1921, 4
      %v1924 = vshll.u32 %v1851, 16
      %v1926 = vrot.slane %v1924, 5
      %v1927 = vsel %vm261, %v1922, %v1926
      %v1929 = vshrl.u32 %v1852, 16
      %v1931 = vrot.slane %v1929, 4
      %v1932 = vshll.u32 %v1852, 16
      %v1934 = vrot.slane %v1932, 5
      %v1935 = vor.u32 %v1931, %v1934
      %v1936 = vrot.slane %v1935, 4
      %v1938 = vshll.u32 %v1853, 16
      %v1940 = vrot.slane %v1938, 5
      %v1941 = vsel %vm261, %v1936, %v1940
      %v1943 = vshrl.u32 %v1854, 16
      %v1945 = vrot.slane %v1943, 4
      %v1946 = vshll.u32 %v1854, 16
      %v1948 = vrot.slane %v1946, 5
      %v1949 = vor.u32 %v1945, %v1948
      %v1950 = vrot.slane %v1949, 4
      %v1952 = vshll.u32 %v1855, 16
      %v1954 = vrot.slane %v1952, 5
      %v1955 = vsel %vm261, %v1950, %v1954
      %v1957 = vshrl.u32 %v1856, 16
      %v1959 = vrot.slane %v1957, 4
      %v1960 = vshll.u32 %v1856, 16
      %v1962 = vrot.slane %v1960, 5
      %v1963 = vor.u32 %v1959, %v1962
      %v1964 = vrot.slane %v1963, 4
      %v1966 = vshll.u32 %v1857, 16
      %v1968 = vrot.slane %v1966, 5
      %v1969 = vsel %vm261, %v1964, %v1968
      %1970 = vrot.lane.b32.xlu0 %v1871, 32
      %v1971 = vpop.permute.xlu0 %1970
      %1972 = vrot.lane.b32.xlu0 %v1885, 32
      %v1973 = vpop.permute.xlu0 %1972
      %1974 = vrot.lane.b32.xlu0 %v1899, 32
      %v1975 = vpop.permute.xlu0 %1974
      %1976 = vrot.lane.b32.xlu0 %v1913, 32
      %v1977 = vpop.permute.xlu0 %1976
      %1978 = vrot.lane.b32.xlu0 %v1927, 32
      %v1979 = vpop.permute.xlu0 %1978
      %1980 = vrot.lane.b32.xlu0 %v1941, 32
      %v1981 = vpop.permute.xlu0 %1980
      %1982 = vrot.lane.b32.xlu0 %v1955, 32
      %v1983 = vpop.permute.xlu0 %1982
      %1984 = vrot.lane.b32.xlu0 %v1969, 32
      %v1985 = vpop.permute.xlu0 %1984
      %vm1994 = vcmask 322816
      %1995 = vst.msk [vmem:[#allocation4] sm:$0xf] %vm1994, %v1971
      %1996 = vst.msk [vmem:[#allocation4 + $0x4] sm:$0xf] %vm1994, %v1973
      %1997 = vst.msk [vmem:[#allocation4 + $0x8] sm:$0xf] %vm1994, %v1975
      %1998 = vst.msk [vmem:[#allocation4 + $0xc] sm:$0xf] %vm1994, %v1977
      %1999 = vst.msk [vmem:[#allocation4 + $0x10] sm:$0xf] %vm1994, %v1979
      %2000 = vst.msk [vmem:[#allocation4 + $0x14] sm:$0xf] %vm1994, %v1981
      %2001 = vst.msk [vmem:[#allocation4 + $0x18] sm:$0xf] %vm1994, %v1983
      %2002 = vst.msk [vmem:[#allocation4 + $0x1c] sm:$0xf] %vm1994, %v1985
      %v2003 = vld [vmem:[%s1468] sm:$0xe]
      %v2004 = vld [vmem:[%s1468 + $0x4] sm:$0x1]
      %v2005 = vld [vmem:[%s1468 + $0x8] sm:$0xe]
      %v2006 = vld [vmem:[%s1468 + $0xc] sm:$0x1]
      %v2007 = vld [vmem:[%s1468 + $0x10] sm:$0xe]
      %v2008 = vld [vmem:[%s1468 + $0x14] sm:$0x1]
      %v2009 = vld [vmem:[%s1468 + $0x18] sm:$0xe]
      %v2010 = vld [vmem:[%s1468 + $0x1c] sm:$0x1]
      %v2011 = vld [vmem:[%s1468 + $0x20] sm:$0xe]
      %v2012 = vld [vmem:[%s1468 + $0x24] sm:$0x1]
      %v2013 = vld [vmem:[%s1468 + $0x28] sm:$0xe]
      %v2014 = vld [vmem:[%s1468 + $0x2c] sm:$0x1]
      %v2015 = vld [vmem:[%s1468 + $0x30] sm:$0xe]
      %v2016 = vld [vmem:[%s1468 + $0x34] sm:$0x1]
      %v2017 = vld [vmem:[%s1468 + $0x38] sm:$0xe]
      %v2018 = vld [vmem:[%s1468 + $0x3c] sm:$0x1]
      %v2035 = vrot.slane %v2003, 5
      %v2036 = vrot.slane %v2035, 4
      %v2037 = vrot.slane %v2004, 5
      %v2038 = vsel %vm441, %v2036, %v2037
      %v2039 = vrot.slane %v2005, 5
      %v2040 = vrot.slane %v2039, 4
      %v2041 = vrot.slane %v2006, 5
      %v2042 = vsel %vm441, %v2040, %v2041
      %v2043 = vrot.slane %v2007, 5
      %v2044 = vrot.slane %v2043, 4
      %v2045 = vrot.slane %v2008, 5
      %v2046 = vsel %vm441, %v2044, %v2045
      %v2047 = vrot.slane %v2009, 5
      %v2048 = vrot.slane %v2047, 4
      %v2049 = vrot.slane %v2010, 5
      %v2050 = vsel %vm441, %v2048, %v2049
      %v2051 = vrot.slane %v2011, 5
      %v2052 = vrot.slane %v2051, 4
      %v2053 = vrot.slane %v2012, 5
      %v2054 = vsel %vm441, %v2052, %v2053
      %v2055 = vrot.slane %v2013, 5
      %v2056 = vrot.slane %v2055, 4
      %v2057 = vrot.slane %v2014, 5
      %v2058 = vsel %vm441, %v2056, %v2057
      %v2059 = vrot.slane %v2015, 5
      %v2060 = vrot.slane %v2059, 4
      %v2061 = vrot.slane %v2016, 5
      %v2062 = vsel %vm441, %v2060, %v2061
      %v2063 = vrot.slane %v2017, 5
      %v2064 = vrot.slane %v2063, 4
      %v2065 = vrot.slane %v2018, 5
      %v2066 = vsel %vm441, %v2064, %v2065
      %2067 = vrot.lane.b32.xlu0 %v2038, 40
      %v2068 = vpop.permute.xlu0 %2067
      %2069 = vrot.lane.b32.xlu0 %v2042, 40
      %v2070 = vpop.permute.xlu0 %2069
      %2071 = vrot.lane.b32.xlu0 %v2046, 40
      %v2072 = vpop.permute.xlu0 %2071
      %2073 = vrot.lane.b32.xlu0 %v2050, 40
      %v2074 = vpop.permute.xlu0 %2073
      %2075 = vrot.lane.b32.xlu0 %v2054, 40
      %v2076 = vpop.permute.xlu0 %2075
      %2077 = vrot.lane.b32.xlu0 %v2058, 40
      %v2078 = vpop.permute.xlu0 %2077
      %2079 = vrot.lane.b32.xlu0 %v2062, 40
      %v2080 = vpop.permute.xlu0 %2079
      %2081 = vrot.lane.b32.xlu0 %v2066, 40
      %v2082 = vpop.permute.xlu0 %2081
      %vm2091 = vcmask 388416
      %2092 = vst.msk [vmem:[#allocation4] sm:$0xf] %vm2091, %v2068
      %2093 = vst.msk [vmem:[#allocation4 + $0x4] sm:$0xf] %vm2091, %v2070
      %2094 = vst.msk [vmem:[#allocation4 + $0x8] sm:$0xf] %vm2091, %v2072
      %2095 = vst.msk [vmem:[#allocation4 + $0xc] sm:$0xf] %vm2091, %v2074
      %2096 = vst.msk [vmem:[#allocation4 + $0x10] sm:$0xf] %vm2091, %v2076
      %2097 = vst.msk [vmem:[#allocation4 + $0x14] sm:$0xf] %vm2091, %v2078
      %2098 = vst.msk [vmem:[#allocation4 + $0x18] sm:$0xf] %vm2091, %v2080
      %2099 = vst.msk [vmem:[#allocation4 + $0x1c] sm:$0xf] %vm2091, %v2082
      %s2100 = scalar_lea.vmem [#allocation3], 16
      %v2101 = vld [vmem:[%s2100] sm:$0xf]
      %v2102 = vld [vmem:[%s2100 + $0x8] sm:$0xf]
      %v2103 = vld [vmem:[%s2100 + $0x10] sm:$0xf]
      %v2104 = vld [vmem:[%s2100 + $0x18] sm:$0xf]
      %v2105 = vld [vmem:[%s2100 + $0x20] sm:$0xf]
      %v2106 = vld [vmem:[%s2100 + $0x28] sm:$0xf]
      %v2107 = vld [vmem:[%s2100 + $0x30] sm:$0xf]
      %v2108 = vld [vmem:[%s2100 + $0x38] sm:$0xf]
      %2117 = vrot.lane.b32.xlu0 %v2101, 48
      %v2118 = vpop.permute.xlu0 %2117
      %2119 = vrot.lane.b32.xlu0 %v2102, 48
      %v2120 = vpop.permute.xlu0 %2119
      %2121 = vrot.lane.b32.xlu0 %v2103, 48
      %v2122 = vpop.permute.xlu0 %2121
      %2123 = vrot.lane.b32.xlu0 %v2104, 48
      %v2124 = vpop.permute.xlu0 %2123
      %2125 = vrot.lane.b32.xlu0 %v2105, 48
      %v2126 = vpop.permute.xlu0 %2125
      %2127 = vrot.lane.b32.xlu0 %v2106, 48
      %v2128 = vpop.permute.xlu0 %2127
      %2129 = vrot.lane.b32.xlu0 %v2107, 48
      %v2130 = vpop.permute.xlu0 %2129
      %2131 = vrot.lane.b32.xlu0 %v2108, 48
      %v2132 = vpop.permute.xlu0 %2131
      %vm2141 = vcmask 454016
      %2142 = vst.msk [vmem:[#allocation4] sm:$0xf] %vm2141, %v2118
      %2143 = vst.msk [vmem:[#allocation4 + $0x4] sm:$0xf] %vm2141, %v2120
      %2144 = vst.msk [vmem:[#allocation4 + $0x8] sm:$0xf] %vm2141, %v2122
      %2145 = vst.msk [vmem:[#allocation4 + $0xc] sm:$0xf] %vm2141, %v2124
      %2146 = vst.msk [vmem:[#allocation4 + $0x10] sm:$0xf] %vm2141, %v2126
      %2147 = vst.msk [vmem:[#allocation4 + $0x14] sm:$0xf] %vm2141, %v2128
      %2148 = vst.msk [vmem:[#allocation4 + $0x18] sm:$0xf] %vm2141, %v2130
      %2149 = vst.msk [vmem:[#allocation4 + $0x1c] sm:$0xf] %vm2141, %v2132
      %v2150 = vld [vmem:[%s2100] sm:$0xf]
      %v2151 = vld [vmem:[%s2100 + $0x4] sm:$0x1]
      %v2152 = vld [vmem:[%s2100 + $0x8] sm:$0xf]
      %v2153 = vld [vmem:[%s2100 + $0xc] sm:$0x1]
      %v2154 = vld [vmem:[%s2100 + $0x10] sm:$0xf]
      %v2155 = vld [vmem:[%s2100 + $0x14] sm:$0x1]
      %v2156 = vld [vmem:[%s2100 + $0x18] sm:$0xf]
      %v2157 = vld [vmem:[%s2100 + $0x1c] sm:$0x1]
      %v2158 = vld [vmem:[%s2100 + $0x20] sm:$0xf]
      %v2159 = vld [vmem:[%s2100 + $0x24] sm:$0x1]
      %v2160 = vld [vmem:[%s2100 + $0x28] sm:$0xf]
      %v2161 = vld [vmem:[%s2100 + $0x2c] sm:$0x1]
      %v2162 = vld [vmem:[%s2100 + $0x30] sm:$0xf]
      %v2163 = vld [vmem:[%s2100 + $0x34] sm:$0x1]
      %v2164 = vld [vmem:[%s2100 + $0x38] sm:$0xf]
      %v2165 = vld [vmem:[%s2100 + $0x3c] sm:$0x1]
      %v2167 = vshrl.u32 %v2150, 16
      %v2169 = vrot.slane %v2167, 4
      %v2170 = vshll.u32 %v2150, 16
      %v2172 = vrot.slane %v2170, 5
      %v2173 = vor.u32 %v2169, %v2172
      %v2174 = vrot.slane %v2173, 4
      %v2176 = vshll.u32 %v2151, 16
      %v2178 = vrot.slane %v2176, 5
      %v2179 = vsel %vm261, %v2174, %v2178
      %v2181 = vshrl.u32 %v2152, 16
      %v2183 = vrot.slane %v2181, 4
      %v2184 = vshll.u32 %v2152, 16
      %v2186 = vrot.slane %v2184, 5
      %v2187 = vor.u32 %v2183, %v2186
      %v2188 = vrot.slane %v2187, 4
      %v2190 = vshll.u32 %v2153, 16
      %v2192 = vrot.slane %v2190, 5
      %v2193 = vsel %vm261, %v2188, %v2192
      %v2195 = vshrl.u32 %v2154, 16
      %v2197 = vrot.slane %v2195, 4
      %v2198 = vshll.u32 %v2154, 16
      %v2200 = vrot.slane %v2198, 5
      %v2201 = vor.u32 %v2197, %v2200
      %v2202 = vrot.slane %v2201, 4
      %v2204 = vshll.u32 %v2155, 16
      %v2206 = vrot.slane %v2204, 5
      %v2207 = vsel %vm261, %v2202, %v2206
      %v2209 = vshrl.u32 %v2156, 16
      %v2211 = vrot.slane %v2209, 4
      %v2212 = vshll.u32 %v2156, 16
      %v2214 = vrot.slane %v2212, 5
      %v2215 = vor.u32 %v2211, %v2214
      %v2216 = vrot.slane %v2215, 4
      %v2218 = vshll.u32 %v2157, 16
      %v2220 = vrot.slane %v2218, 5
      %v2221 = vsel %vm261, %v2216, %v2220
      %v2223 = vshrl.u32 %v2158, 16
      %v2225 = vrot.slane %v2223, 4
      %v2226 = vshll.u32 %v2158, 16
      %v2228 = vrot.slane %v2226, 5
      %v2229 = vor.u32 %v2225, %v2228
      %v2230 = vrot.slane %v2229, 4
      %v2232 = vshll.u32 %v2159, 16
      %v2234 = vrot.slane %v2232, 5
      %v2235 = vsel %vm261, %v2230, %v2234
      %v2237 = vshrl.u32 %v2160, 16
      %v2239 = vrot.slane %v2237, 4
      %v2240 = vshll.u32 %v2160, 16
      %v2242 = vrot.slane %v2240, 5
      %v2243 = vor.u32 %v2239, %v2242
      %v2244 = vrot.slane %v2243, 4
      %v2246 = vshll.u32 %v2161, 16
      %v2248 = vrot.slane %v2246, 5
      %v2249 = vsel %vm261, %v2244, %v2248
      %v2251 = vshrl.u32 %v2162, 16
      %v2253 = vrot.slane %v2251, 4
      %v2254 = vshll.u32 %v2162, 16
      %v2256 = vrot.slane %v2254, 5
      %v2257 = vor.u32 %v2253, %v2256
      %v2258 = vrot.slane %v2257, 4
      %v2260 = vshll.u32 %v2163, 16
      %v2262 = vrot.slane %v2260, 5
      %v2263 = vsel %vm261, %v2258, %v2262
      %v2265 = vshrl.u32 %v2164, 16
      %v2267 = vrot.slane %v2265, 4
      %v2268 = vshll.u32 %v2164, 16
      %v2270 = vrot.slane %v2268, 5
      %v2271 = vor.u32 %v2267, %v2270
      %v2272 = vrot.slane %v2271, 4
      %v2274 = vshll.u32 %v2165, 16
      %v2276 = vrot.slane %v2274, 5
      %v2277 = vsel %vm261, %v2272, %v2276
      %2278 = vrot.lane.b32.xlu0 %v2179, 56
      %v2279 = vpop.permute.xlu0 %2278
      %2280 = vrot.lane.b32.xlu0 %v2193, 56
      %v2281 = vpop.permute.xlu0 %2280
      %2282 = vrot.lane.b32.xlu0 %v2207, 56
      %v2283 = vpop.permute.xlu0 %2282
      %2284 = vrot.lane.b32.xlu0 %v2221, 56
      %v2285 = vpop.permute.xlu0 %2284
      %2286 = vrot.lane.b32.xlu0 %v2235, 56
      %v2287 = vpop.permute.xlu0 %2286
      %2288 = vrot.lane.b32.xlu0 %v2249, 56
      %v2289 = vpop.permute.xlu0 %2288
      %2290 = vrot.lane.b32.xlu0 %v2263, 56
      %v2291 = vpop.permute.xlu0 %2290
      %2292 = vrot.lane.b32.xlu0 %v2277, 56
      %v2293 = vpop.permute.xlu0 %2292
      %vm2302 = vcmask 519616
      %2303 = vst.msk [vmem:[#allocation4] sm:$0xf] %vm2302, %v2279
      %2304 = vst.msk [vmem:[#allocation4 + $0x4] sm:$0xf] %vm2302, %v2281
      %2305 = vst.msk [vmem:[#allocation4 + $0x8] sm:$0xf] %vm2302, %v2283
      %2306 = vst.msk [vmem:[#allocation4 + $0xc] sm:$0xf] %vm2302, %v2285
      %2307 = vst.msk [vmem:[#allocation4 + $0x10] sm:$0xf] %vm2302, %v2287
      %2308 = vst.msk [vmem:[#allocation4 + $0x14] sm:$0xf] %vm2302, %v2289
      %2309 = vst.msk [vmem:[#allocation4 + $0x18] sm:$0xf] %vm2302, %v2291
      %2310 = vst.msk [vmem:[#allocation4 + $0x1c] sm:$0xf] %vm2302, %v2293
      %v2311 = vld [vmem:[%s2100] sm:$0xe]
      %v2312 = vld [vmem:[%s2100 + $0x4] sm:$0x1]
      %v2313 = vld [vmem:[%s2100 + $0x8] sm:$0xe]
      %v2314 = vld [vmem:[%s2100 + $0xc] sm:$0x1]
      %v2315 = vld [vmem:[%s2100 + $0x10] sm:$0xe]
      %v2316 = vld [vmem:[%s2100 + $0x14] sm:$0x1]
      %v2317 = vld [vmem:[%s2100 + $0x18] sm:$0xe]
      %v2318 = vld [vmem:[%s2100 + $0x1c] sm:$0x1]
      %v2319 = vld [vmem:[%s2100 + $0x20] sm:$0xe]
      %v2320 = vld [vmem:[%s2100 + $0x24] sm:$0x1]
      %v2321 = vld [vmem:[%s2100 + $0x28] sm:$0xe]
      %v2322 = vld [vmem:[%s2100 + $0x2c] sm:$0x1]
      %v2323 = vld [vmem:[%s2100 + $0x30] sm:$0xe]
      %v2324 = vld [vmem:[%s2100 + $0x34] sm:$0x1]
      %v2325 = vld [vmem:[%s2100 + $0x38] sm:$0xe]
      %v2326 = vld [vmem:[%s2100 + $0x3c] sm:$0x1]
      %v2343 = vrot.slane %v2311, 5
      %v2344 = vrot.slane %v2343, 4
      %v2345 = vrot.slane %v2312, 5
      %v2346 = vsel %vm441, %v2344, %v2345
      %v2347 = vrot.slane %v2313, 5
      %v2348 = vrot.slane %v2347, 4
      %v2349 = vrot.slane %v2314, 5
      %v2350 = vsel %vm441, %v2348, %v2349
      %v2351 = vrot.slane %v2315, 5
      %v2352 = vrot.slane %v2351, 4
      %v2353 = vrot.slane %v2316, 5
      %v2354 = vsel %vm441, %v2352, %v2353
      %v2355 = vrot.slane %v2317, 5
      %v2356 = vrot.slane %v2355, 4
      %v2357 = vrot.slane %v2318, 5
      %v2358 = vsel %vm441, %v2356, %v2357
      %v2359 = vrot.slane %v2319, 5
      %v2360 = vrot.slane %v2359, 4
      %v2361 = vrot.slane %v2320, 5
      %v2362 = vsel %vm441, %v2360, %v2361
      %v2363 = vrot.slane %v2321, 5
      %v2364 = vrot.slane %v2363, 4
      %v2365 = vrot.slane %v2322, 5
      %v2366 = vsel %vm441, %v2364, %v2365
      %v2367 = vrot.slane %v2323, 5
      %v2368 = vrot.slane %v2367, 4
      %v2369 = vrot.slane %v2324, 5
      %v2370 = vsel %vm441, %v2368, %v2369
      %v2371 = vrot.slane %v2325, 5
      %v2372 = vrot.slane %v2371, 4
      %v2373 = vrot.slane %v2326, 5
      %v2374 = vsel %vm441, %v2372, %v2373
      %2375 = vrot.lane.b32.xlu0 %v2346, 64
      %v2376 = vpop.permute.xlu0 %2375
      %2377 = vrot.lane.b32.xlu0 %v2350, 64
      %v2378 = vpop.permute.xlu0 %2377
      %2379 = vrot.lane.b32.xlu0 %v2354, 64
      %v2380 = vpop.permute.xlu0 %2379
      %2381 = vrot.lane.b32.xlu0 %v2358, 64
      %v2382 = vpop.permute.xlu0 %2381
      %2383 = vrot.lane.b32.xlu0 %v2362, 64
      %v2384 = vpop.permute.xlu0 %2383
      %2385 = vrot.lane.b32.xlu0 %v2366, 64
      %v2386 = vpop.permute.xlu0 %2385
      %2387 = vrot.lane.b32.xlu0 %v2370, 64
      %v2388 = vpop.permute.xlu0 %2387
      %2389 = vrot.lane.b32.xlu0 %v2374, 64
      %v2390 = vpop.permute.xlu0 %2389
      %vm2399 = vcmask 585216
      %2400 = vst.msk [vmem:[#allocation4] sm:$0xf] %vm2399, %v2376
      %2401 = vst.msk [vmem:[#allocation4 + $0x4] sm:$0xf] %vm2399, %v2378
      %2402 = vst.msk [vmem:[#allocation4 + $0x8] sm:$0xf] %vm2399, %v2380
      %2403 = vst.msk [vmem:[#allocation4 + $0xc] sm:$0xf] %vm2399, %v2382
      %2404 = vst.msk [vmem:[#allocation4 + $0x10] sm:$0xf] %vm2399, %v2384
      %2405 = vst.msk [vmem:[#allocation4 + $0x14] sm:$0xf] %vm2399, %v2386
      %2406 = vst.msk [vmem:[#allocation4 + $0x18] sm:$0xf] %vm2399, %v2388
      %2407 = vst.msk [vmem:[#allocation4 + $0x1c] sm:$0xf] %vm2399, %v2390
      %v2408 = vld [vmem:[#allocation4] sm:$0xf]
      %v2409 = vld [vmem:[#allocation4 + $0x4] sm:$0xf]
      %v2410 = vld [vmem:[#allocation4 + $0x8] sm:$0xf]
      %v2411 = vld [vmem:[#allocation4 + $0xc] sm:$0xf]
      %v2412 = vld [vmem:[#allocation4 + $0x10] sm:$0xf]
      %v2413 = vld [vmem:[#allocation4 + $0x14] sm:$0xf]
      %v2414 = vld [vmem:[#allocation4 + $0x18] sm:$0xf]
      %v2415 = vld [vmem:[#allocation4 + $0x1c] sm:$0xf]
      %v2416 = vld [vmem:[%s3] sm:$0xf]
      %v2417 = vld [vmem:[%s3 + $0x4] sm:$0xf]
      %v2418 = vld [vmem:[%s3 + $0x8] sm:$0xf]
      %v2419 = vld [vmem:[%s3 + $0xc] sm:$0xf]
      %v2420 = vld [vmem:[%s3 + $0x10] sm:$0xf]
      %v2421 = vld [vmem:[%s3 + $0x14] sm:$0xf]
      %v2422 = vld [vmem:[%s3 + $0x18] sm:$0xf]
      %v2423 = vld [vmem:[%s3 + $0x1c] sm:$0xf]
      %v2424 = vld [vmem:[%s3 + $0x20] sm:$0xf]
      %v2425 = vld [vmem:[%s4] sm:$0x1]
      %v2427 = vlaneseq
      %v2428 = vshrl.u32 %v2427, 7
      %v2429 = vsub.s32 0, %v2428
      %v2430 = vrot.slane %v2425, %v2429
      %v2440 = vunpack.c.l.b16 %v2408
      %v2441 = vunpack.c.l.b16 %v2409
      %v2442 = vunpack.c.l.b16 %v2410
      %v2443 = vunpack.c.l.b16 %v2411
      %v2444 = vunpack.c.l.b16 %v2412
      %v2445 = vunpack.c.l.b16 %v2413
      %v2446 = vunpack.c.l.b16 %v2414
      %v2447 = vunpack.c.l.b16 %v2415
      %v2448 = vpack.c.b16 %v2441, %v2440
      %v2449 = vpack.c.b16 %v2443, %v2442
      %v2450 = vpack.c.b16 %v2445, %v2444
      %v2451 = vpack.c.b16 %v2447, %v2446
      %v2461 = vunpack.c.l.b16 %v2416
      %v2462 = vunpack.c.l.b16 %v2417
      %v2463 = vunpack.c.l.b16 %v2418
      %v2464 = vunpack.c.l.b16 %v2419
      %v2465 = vunpack.c.l.b16 %v2420
      %v2466 = vunpack.c.l.b16 %v2421
      %v2467 = vunpack.c.l.b16 %v2422
      %v2468 = vunpack.c.l.b16 %v2423
      %v2469 = vunpack.c.l.b16 %v2424
      %v2470 = vpack.c.b16 %v2462, %v2461
      %v2471 = vpack.c.b16 %v2464, %v2463
      %v2472 = vpack.c.b16 %v2466, %v2465
      %v2473 = vpack.c.b16 %v2468, %v2467
      %v2474 = vpack.c.b16 %v2469, %v2469
      %vm2479 = vcmask 588800
      %v2481 = vsel %vm2479, %v2448, 0
      %v2484 = vsel %vm2479, %v2449, 0
      %v2487 = vsel %vm2479, %v2450, 0
      %v2490 = vsel %vm2479, %v2451, 0
      %vm2492 = vcmask 1043456
      %v2494 = vsel %vm2492, %v2474, 0
      %2496 = vmatprep.subr.bf16.mxu0 0
      %2497 = vmatpush1.bf16.msra.mxu0 0
      %2498 = vmatprep.subr.bf16.mxu0 0
      %2499 = vmatpush1.bf16.msra.mxu0 0
      %2500 = vmatprep.subr.bf16.mxu0 0
      %2501 = vmatpush1.bf16.msra.mxu0 0
      %2502 = vmatprep.subr.bf16.mxu0 0
      %2503 = vmatpush1.bf16.msra.mxu0 %v2494
      %2504 = vmatprep.subr.bf16.mxu0 0
      %2505 = vmatpush1.bf16.msra.mxu0 %v2473
      %2506 = vmatprep.subr.bf16.mxu0 0
      %2507 = vmatpush1.bf16.msra.mxu0 %v2472
      %2508 = vmatprep.subr.bf16.mxu0 0
      %2509 = vmatpush1.bf16.msra.mxu0 %v2471
      %2510 = vmatprep.subr.bf16.mxu0 0
      %2511 = vmatpush1.bf16.msra.mxu0 %v2470
      %2512 = vmatprep.subr.bf16.mxu0 0
      %2513 = vmatpush2.bf16.msra.mxu0 0
      %2514 = vmatprep.subr.bf16.mxu0 0
      %2515 = vmatpush2.bf16.msra.mxu0 0
      %2516 = vmatprep.subr.bf16.mxu0 0
      %2517 = vmatpush2.bf16.msra.mxu0 0
      %2518 = vmatprep.subr.bf16.mxu0 0
      %2519 = vmatpush2.bf16.msra.mxu0 0
      %2520 = vmatprep.subr.bf16.mxu0 0
      %2521 = vmatpush2.bf16.msra.mxu0 0
      %2522 = vmatprep.subr.bf16.mxu0 0
      %2523 = vmatpush2.bf16.msra.mxu0 0
      %2524 = vmatprep.subr.bf16.mxu0 0
      %2525 = vmatpush2.bf16.msra.mxu0 0
      %2526 = vmatprep.subr.bf16.mxu0 0
      %2527 = vmatpush2.bf16.msra.mxu0 0
      %2528 = vmatprep.mubr.bf16.mxu0 0
      %2529 = vmatmul.mubr.bf16.gmra.mxu0 %v2481
      %v2530 = vpop.f32.mrf.mxu0
      %v2531 = vadd.f32 %v2430, %v2530
      %v2532 = vpop.f32.mrf.mxu0
      %v2533 = vpop.f32.mrf.mxu0
      %v2534 = vadd.f32 %v2430, %v2533
      %v2535 = vpop.f32.mrf.mxu0
      %2536 = vmatprep.mubr.bf16.mxu0 0
      %2537 = vmatmul.mubr.bf16.gmra.mxu0 %v2484
      %v2538 = vpop.f32.mrf.mxu0
      %v2539 = vadd.f32 %v2430, %v2538
      %v2540 = vpop.f32.mrf.mxu0
      %v2541 = vpop.f32.mrf.mxu0
      %v2542 = vadd.f32 %v2430, %v2541
      %v2543 = vpop.f32.mrf.mxu0
      %2544 = vmatprep.mubr.bf16.mxu0 0
      %2545 = vmatmul.mubr.bf16.gmra.mxu0 %v2487
      %v2546 = vpop.f32.mrf.mxu0
      %v2547 = vadd.f32 %v2430, %v2546
      %v2548 = vpop.f32.mrf.mxu0
      %v2549 = vpop.f32.mrf.mxu0
      %v2550 = vadd.f32 %v2430, %v2549
      %v2551 = vpop.f32.mrf.mxu0
      %2552 = vmatprep.mubr.bf16.mxu0 0
      %2553 = vmatmul.mubr.bf16.gmra.mxu0 %v2490
      %v2554 = vpop.f32.mrf.mxu0
      %v2555 = vadd.f32 %v2430, %v2554
      %v2556 = vpop.f32.mrf.mxu0
      %v2557 = vpop.f32.mrf.mxu0
      %v2558 = vadd.f32 %v2430, %v2557
      %v2559 = vpop.f32.mrf.mxu0
      %2560 = vdwg.mxu0
      %vm2561 = vcmp.gt.f32.partialorder %v2531, 0.0
      %vm2562 = vcmp.gt.f32.partialorder %v2534, 0.0
      %vm2563 = vcmp.gt.f32.partialorder %v2539, 0.0
      %vm2564 = vcmp.gt.f32.partialorder %v2542, 0.0
      %vm2565 = vcmp.gt.f32.partialorder %v2547, 0.0
      %vm2566 = vcmp.gt.f32.partialorder %v2550, 0.0
      %vm2567 = vcmp.gt.f32.partialorder %v2555, 0.0
      %vm2568 = vcmp.gt.f32.partialorder %v2558, 0.0
      %v2569 = vmul.f32 %v2531, 0.01
      %v2570 = vmul.f32 %v2534, 0.01
      %v2571 = vmul.f32 %v2539, 0.01
      %v2572 = vmul.f32 %v2542, 0.01
      %v2573 = vmul.f32 %v2547, 0.01
      %v2574 = vmul.f32 %v2550, 0.01
      %v2575 = vmul.f32 %v2555, 0.01
      %v2576 = vmul.f32 %v2558, 0.01
      %v2577 = vsel %vm2561, %v2531, %v2569
      %v2578 = vsel %vm2562, %v2534, %v2570
      %v2579 = vsel %vm2563, %v2539, %v2571
      %v2580 = vsel %vm2564, %v2542, %v2572
      %v2581 = vsel %vm2565, %v2547, %v2573
      %v2582 = vsel %vm2566, %v2550, %v2574
      %v2583 = vsel %vm2567, %v2555, %v2575
      %v2584 = vsel %vm2568, %v2558, %v2576
      %vm2585 = vcmask 64512
      %2586 = vst.msk [vmem:[%s224] sm:$0xff] %vm2585, %v2577
      %2587 = vst.msk [vmem:[%s224 + $0x8] sm:$0xff] %vm2585, %v2578
      %2588 = vst.msk [vmem:[%s224 + $0x10] sm:$0xff] %vm2585, %v2579
      %2589 = vst.msk [vmem:[%s224 + $0x18] sm:$0xff] %vm2585, %v2580
      %2590 = vst.msk [vmem:[%s224 + $0x20] sm:$0xff] %vm2585, %v2581
      %2591 = vst.msk [vmem:[%s224 + $0x28] sm:$0xff] %vm2585, %v2582
      %2592 = vst.msk [vmem:[%s224 + $0x30] sm:$0xff] %vm2585, %v2583
      %2593 = vst.msk [vmem:[%s224 + $0x38] sm:$0xff] %vm2585, %v2584
      %p2594 = scmp.lt.s32.totalorder %s16, 1
      %s2595 = scalar_select %p2594, %s16, 1
      %s2596 = smul.addr %s2595, 8
      %s2597 = smul.addr %s2596, 8
      %s2598 = scalar_lea.vmem %s5, %s2597
      // Predicated region
      $region41: #{down_forward.1} parent=39 // pred_check
        %p2599 = pneg %p144
      $region42: #{down_forward.1} parent=39 // pred_check_branch
        %2601 = sbr.rel (%p2599) target = $region44
      $region43: #{down_forward.1} parent=39 // pred_region
        _
      $region44: #{down_forward.1} parent=39 // pred_fallthru
        _
    $region40: #{down_forward.1} parent=5 // pred_fallthru
      _
    %p2602 = scmp.le.s32.totalorder 2, %s11
    // Predicated region
    $region45: #{down_forward.1} parent=5 // pred_check
      %p2603 = pneg %p2602
    $region46: #{down_forward.1} parent=5 // pred_check_branch
      %2605 = sbr.rel (%p2603) target = $region48
    $region47: #{down_forward.1} parent=5 // pred_region
      %s2606 = ssub.s32 %s11, 2
      // Predicated region
      $region49: #{down_forward.1} parent=47 // pred_check
        %p2607 = pneg %p150
      $region50: #{down_forward.1} parent=47 // pred_check_branch
        %2609 = sbr.rel (%p2607) target = $region52
      $region51: #{down_forward.1} parent=47 // pred_region
        %p2610 = scmp.lt.s32.totalorder %s17, 1
        %s2611 = scalar_select %p2610, %s17, 1
        %s2612 = smul.addr %s2611, 8
        %s2613 = smul.addr %s2612, 8
        %s2614 = scalar_lea.vmem %s5, %s2613
      $region52: #{down_forward.1} parent=47 // pred_fallthru
        _
    $region48: #{down_forward.1} parent=5 // pred_fallthru
      _
  $region6: #{down_forward.1} parent=0 // loop_footer
    %s15 = sadd.s32 1, %s11
  $region7: #{down_forward.1} parent=0 // loop_footer_branch
    %10 = sbr.rel target = $region3
  $region8: #{down_forward.1} parent=0 // loop_exit
    _

</llo_original>
